<compile_context>
chip_gen: v5e
topology: v5e:2x2
jax: 0.10.0
libtpu: 0.0.40
codegen_flags: <defaults>
</compile_context>

<pallas_src>
import functools

import jax
import jax.numpy as jnp
from jax import lax
from jax.experimental import pallas as pl
from jax.experimental.pallas import tpu as pltpu


def _lstm_cell(gates, c, H):
    """One LSTM cell update, PyTorch nn.LSTM gate order (i, f, g, o).

    gates: (B, 4H) float32.  When 4H == 128 (exactly one vreg of lanes) the
    nonlinearities are evaluated on the full vreg (2 EUP chains instead of 4)
    and the f/g/o quarters are aligned to lanes [0, H) with XLU rolls, which
    run in an otherwise-idle slot.
    """
    if 4 * H == 128:
        sg = jax.nn.sigmoid(gates)                        # [σ(i)|σ(f)| -- |σ(o)]
        tg = jnp.tanh(gates)                              # [ -- | -- |  g | -- ]
        i = sg[:, :H]
        f = pltpu.roll(sg, shift=3 * H, axis=1)[:, :H]    # lanes [H,2H)  -> [0,H)
        g = pltpu.roll(tg, shift=2 * H, axis=1)[:, :H]    # lanes [2H,3H) -> [0,H)
        o = pltpu.roll(sg, shift=H, axis=1)[:, :H]        # lanes [3H,4H) -> [0,H)
    else:
        i = jax.nn.sigmoid(gates[:, 0 * H:1 * H])
        f = jax.nn.sigmoid(gates[:, 1 * H:2 * H])
        g = jnp.tanh(gates[:, 2 * H:3 * H])
        o = jax.nn.sigmoid(gates[:, 3 * H:4 * H])
    c_new = f * c + i * g
    h_new = o * jnp.tanh(c_new)
    return h_new, c_new


def aad_kernel(w_ref, misc_ref, out_ref, *, B, T, D, H, L, S):
    f32, bf16 = jnp.float32, jnp.bfloat16
    G = 4 * H

    # ---- bf16 weight slab (loaded once, hoisted above the unrolled loops) ----
    w_enc = w_ref[0:D + H, 0:G]                  # [wih_e ; whh_e]        (D+H, 4H)
    w_dec = w_ref[D + H:D + 2 * H, 0:G + D]      # [whh_d | wout]         (H, 4H+D)
    w_out = w_ref[D + H:D + 2 * H, G:G + D]      # wout alone (for rec_S) (H, D)
    w_dsc = w_ref[D + 2 * H:2 * D + 3 * H, 0:G]  # [wih_s ; whh_s]        (D+H, 4H)

    # ---- f32 misc slab: biases, f32 heads, noise, x ----
    b_e = misc_ref[0:1, 0:G]
    b_d = misc_ref[1:2, 0:G]
    b_s = misc_ref[2:3, 0:G]
    b_mulv = misc_ref[3:4, 0:2 * L]
    b_l2h = misc_ref[4:5, 0:H]
    b_out = misc_ref[5:6, 0:D]
    b_dsc = misc_ref[6:7, 0:1]
    wd_row = misc_ref[7:8, 0:H]                  # discriminator head weights (f32 row)
    r = 8
    w_mulv = misc_ref[r:r + H, 0:2 * L]          # f32 [hidden_to_mu | hidden_to_logvar]
    r += H
    w_l2h = misc_ref[r:r + L, 0:H]               # f32 latent_to_hidden
    r += L
    noise = misc_ref[r:r + B, 0:L]
    r += B
    x2d = misc_ref[r:r + B, 0:T * D]             # x rows: (b, t*D + d)

    # Zero the whole output slab once (defines the padding lanes).
    out_ref[...] = jnp.zeros_like(out_ref)

    # ---------------- Encoder LSTM (K-stacked input+recurrent matmul) ----------------
    h_e = jnp.zeros((B, H), f32)
    c_e = jnp.zeros((B, H), f32)
    for t in range(T):                           # fully unrolled (T is static)
        lhs = jnp.concatenate([x2d[:, t * D:(t + 1) * D], h_e], axis=1).astype(bf16)
        gates = jnp.dot(lhs, w_enc, preferred_element_type=f32) + b_e
        h_e, c_e = _lstm_cell(gates, c_e, H)

    # -------- Reparameterization (mu & logvar fused, f32 head off the chain) --------
    mulv = jnp.dot(h_e, w_mulv, preferred_element_type=f32) + b_mulv
    mu, lv = mulv[:, :L], mulv[:, L:]
    z = mu + jnp.exp(0.5 * lv) * noise

    # ---------- Decoder + Discriminator (fused, wout folded into the dec matmul) ----------
    h_d = jnp.dot(z, w_l2h, preferred_element_type=f32) + b_l2h      # h_0
    c_d = jnp.zeros((B, H), f32)
    h_s = jnp.zeros((B, H), f32)
    c_s = jnp.zeros((B, H), f32)

    def disc_step(rec_t, hs, cs):
        # K-stacked: one push gives rec_t @ wih_s + hs @ whh_s.
        lhs = jnp.concatenate([rec_t, hs], axis=1).astype(bf16)
        gates = jnp.dot(lhs, w_dsc, preferred_element_type=f32) + b_s
        return _lstm_cell(gates, cs, H)

    for t in range(1, S + 1):                    # fully unrolled (S is static)
        # One push on h_{t-1}: gates for h_t AND rec_{t-1} (valid for t >= 2).
        fused = jnp.dot(h_d.astype(bf16), w_dec, preferred_element_type=f32)
        if t >= 2:
            rec_prev = fused[:, G:G + D] + b_out
            out_ref[:, (t - 2) * D:(t - 1) * D] = rec_prev       # per-step store
            h_s, c_s = disc_step(rec_prev, h_s, c_s)
        h_d, c_d = _lstm_cell(fused[:, 0:G] + b_d, c_d, H)

    # Final reconstruction step (rec_S from h_S) + last discriminator step.
    rec_last = jnp.dot(h_d.astype(bf16), w_out, preferred_element_type=f32) + b_out
    out_ref[:, (S - 1) * D:S * D] = rec_last
    h_s, c_s = disc_step(rec_last, h_s, c_s)

    # Discriminator head: VPU multiply + lane reduction (avoid an N=1 MXU matmul).
    logit = jnp.sum(h_s * wd_row, axis=-1, keepdims=True) + b_dsc
    prob = jax.nn.sigmoid(logit)

    # Packed stats: [ z | mu | logvar | prob ] right after the reconstruction lanes.
    base = S * D
    out_ref[:, base:base + L] = z
    out_ref[:, base + L:base + 3 * L] = mulv
    out_ref[:, base + 3 * L:base + 3 * L + 1] = prob


def init_params(key, input_dim, hidden_dim, latent_dim):
    """Deterministic synthetic parameters (PyTorch shapes, transposed to (in, out))."""
    ks = jax.random.split(key, 16)
    s = lambda fan_in: 1.0 / jnp.sqrt(jnp.float32(fan_in))

    def mat(k, shape, fan_in):
        return (jax.random.normal(k, shape, jnp.float32) * s(fan_in)).astype(jnp.float32)

    H, D, L = hidden_dim, input_dim, latent_dim
    p = {}
    # encoder LSTM
    p["wih_e"] = mat(ks[0], (D, 4 * H), D)
    p["whh_e"] = mat(ks[1], (H, 4 * H), H)
    p["b_e"] = mat(ks[2], (1, 4 * H), H)            # b_ih + b_hh pre-summed
    # encoder heads
    p["wmu"] = mat(ks[3], (H, L), H)
    p["bmu"] = mat(ks[4], (1, L), H)
    p["wlv"] = mat(ks[5], (H, L), H)
    p["blv"] = mat(ks[6], (1, L), H)
    # decoder
    p["wl2h"] = mat(ks[7], (L, H), L)
    p["bl2h"] = mat(ks[8], (1, H), L)
    p["whh_d"] = mat(ks[9], (H, 4 * H), H)
    p["b_d"] = mat(ks[10], (1, 4 * H), H)           # b_ih + b_hh pre-summed
    p["wout"] = mat(ks[11], (H, D), H)
    p["bout"] = mat(ks[12], (1, D), H)
    # discriminator
    p["wih_s"] = mat(ks[13], (D, 4 * H), D)
    p["whh_s"] = mat(ks[14], (H, 4 * H), H)
    p["b_s"] = mat(ks[15], (1, 4 * H), H)           # b_ih + b_hh pre-summed
    k2 = jax.random.split(ks[15], 2)
    p["wd"] = mat(k2[0], (H, 1), H)
    p["bd"] = mat(k2[1], (1, 1), H)
    return p


def _pack_inputs(x, noise, p):
    """Pack everything into 2 slabs (2 input DMAs total): bf16 weights, f32 misc."""
    D = p["wih_e"].shape[0]
    H = p["whh_e"].shape[0]
    L = p["wmu"].shape[1]
    B, T, _ = x.shape
    G = 4 * H
    W = G + D
    bf16 = jnp.bfloat16

    pad_w = lambda a: jnp.pad(a, ((0, 0), (0, W - a.shape[1])))
    w_slab = jnp.concatenate([
        pad_w(jnp.concatenate([p["wih_e"], p["whh_e"]], axis=0)),   # enc K-stack
        jnp.concatenate([p["whh_d"], p["wout"]], axis=1),           # dec [whh_d | wout]
        pad_w(jnp.concatenate([p["wih_s"], p["whh_s"]], axis=0)),   # disc K-stack
    ], axis=0).astype(bf16)                                         # (2D+3H, 4H+D)

    Wm = G                                                          # 128 lanes
    pad_m = lambda a: jnp.pad(a, ((0, 0), (0, Wm - a.shape[1])))
    x2d = x.reshape(B, T * D)                                       # no transpose
    misc = jnp.concatenate([
        p["b_e"], p["b_d"], p["b_s"],
        pad_m(jnp.concatenate([p["bmu"], p["blv"]], axis=1)),
        pad_m(p["bl2h"]), pad_m(p["bout"]), pad_m(p["bd"]), pad_m(p["wd"].T),
        pad_m(jnp.concatenate([p["wmu"], p["wlv"]], axis=1)),       # f32 head
        pad_m(p["wl2h"]),                                           # f32 head
        pad_m(noise),
        pad_m(x2d),
    ], axis=0).astype(jnp.float32)
    return w_slab, misc


@functools.partial(jax.jit, static_argnames=("seq_len",))
def aad_forward(x, noise, params, seq_len):
    """x: (B, T, D_in) batch_first like PyTorch; noise: (B, latent_dim)."""
    B, T, D = x.shape
    H = params["whh_e"].shape[0]
    L = params["wmu"].shape[1]
    S = seq_len
    OUT_W = 4 * H                                  # 128 lanes: lane-dense output slab
    assert S * D + 3 * L + 1 <= OUT_W, "output slab too narrow"
    assert T * D <= 4 * H and 2 * L <= 4 * H, "misc slab too narrow"

    w_slab, misc = _pack_inputs(x, noise.astype(jnp.float32), params)

    kernel = functools.partial(aad_kernel, B=B, T=T, D=D, H=H, L=L, S=S)
    vmem = pl.BlockSpec(memory_space=pltpu.MemorySpace.VMEM)
    out = pl.pallas_call(
        kernel,
        out_shape=jax.ShapeDtypeStruct((B, OUT_W), jnp.float32),
        in_specs=[vmem, vmem],
        out_specs=vmem,
    )(w_slab, misc)

    # Pure slicing / reshape — no transposes around the pallas_call.
    rec = out[:, :S * D].reshape(B, S, D)
    base = S * D
    z = out[:, base:base + L]
    mu = out[:, base + L:base + 2 * L]
    lv = out[:, base + 2 * L:base + 3 * L]
    prob = out[:, base + 3 * L:base + 3 * L + 1]
    return rec, prob, z, mu, lv


# ---------------- pure-JAX f32 reference (for validation) ----------------
def _lstm_scan(x_tm, wih, whh, b, h0, c0, H):
    def step(carry, xt):
        h, c = carry
        gates = xt @ wih + h @ whh + b
        i = jax.nn.sigmoid(gates[:, 0 * H:1 * H])
        f = jax.nn.sigmoid(gates[:, 1 * H:2 * H])
        g = jnp.tanh(gates[:, 2 * H:3 * H])
        o = jax.nn.sigmoid(gates[:, 3 * H:4 * H])
        c = f * c + i * g
        h = o * jnp.tanh(c)
        return (h, c), h
    (h, c), hs = lax.scan(step, (h0, c0), x_tm)
    return hs, h


def aad_forward_ref(x, noise, p, seq_len):
    B, T, D = x.shape
    H = p["whh_e"].shape[0]
    x_tm = jnp.transpose(x, (1, 0, 2))
    z0 = jnp.zeros((B, H), jnp.float32)
    _, h_enc = _lstm_scan(x_tm, p["wih_e"], p["whh_e"], p["b_e"], z0, z0, H)
    mu = h_enc @ p["wmu"] + p["bmu"]
    lv = h_enc @ p["wlv"] + p["blv"]
    z = mu + jnp.exp(0.5 * lv) * noise
    h_dec0 = z @ p["wl2h"] + p["bl2h"]
    zeros_in = jnp.zeros((seq_len, B, H), jnp.float32)
    hs, _ = _lstm_scan(zeros_in, jnp.zeros((H, 4 * H), jnp.float32), p["whh_d"],
                       p["b_d"], h_dec0, jnp.zeros_like(h_dec0), H)
    rec_tm = hs @ p["wout"] + p["bout"]
    _, h_disc = _lstm_scan(rec_tm, p["wih_s"], p["whh_s"], p["b_s"], z0, z0, H)
    prob = jax.nn.sigmoid(h_disc @ p["wd"] + p["bd"])
    return jnp.transpose(rec_tm, (1, 0, 2)), prob, z, mu, lv


if __name__ == "__main__":
    B, T, D_IN, HID, LAT = 2, 8, 8, 32, 16
    SEQ_LEN = 8

    key = jax.random.PRNGKey(0)
    kx, kn, kp = jax.random.split(key, 3)
    x = jax.random.normal(kx, (B, T, D_IN), jnp.float32)
    # torch.randn_like(std) replaced by an explicit host-generated noise input.
    noise = jax.random.normal(kn, (B, LAT), jnp.float32)
    params = init_params(kp, D_IN, HID, LAT)

    rec, prob, z, mu, lv = jax.block_until_ready(
        aad_forward(x, noise, params, SEQ_LEN))

    rec_r, prob_r, z_r, mu_r, lv_r = aad_forward_ref(x, noise, params, SEQ_LEN)
    # The kernel uses bf16 MXU operands on the recurrent chains (f32 accumulation,
    # f32 gate math/state, f32 mu/logvar heads), so compare against the pure-f32
    # reference at bf16-appropriate tolerances.
    for a, b, name in [(rec, rec_r, "rec"), (prob, prob_r, "prob"),
                       (z, z_r, "z"), (mu, mu_r, "mu"), (lv, lv_r, "logvar")]:
        assert a.shape == b.shape, (name, a.shape, b.shape)
        assert jnp.allclose(a, b, rtol=5e-2, atol=5e-2), name

    print("KERNEL_OK")
</pallas_src>

<mosaic_0001>
module attributes {stable_mosaic.version = 11 : i64} {
  func.func @aad_kernel(%arg0: memref<112x136xbf16, #tpu.memory_space<vmem>>, %arg1: memref<60x128xf32, #tpu.memory_space<vmem>>, %arg2: memref<2x128xf32, #tpu.memory_space<vmem>>) attributes {dimension_semantics = [], scalar_prefetch = 0 : i64, scratch_operands = 0 : i64, tpu.core_type = #tpu.core_type<tc>} {
    %c0 = arith.constant 0 : index
    %c0_0 = arith.constant 0 : index
    %0 = vector.load %arg0[%c0, %c0_0] : memref<112x136xbf16, #tpu.memory_space<vmem>>, vector<40x128xbf16>
    %c40 = arith.constant 40 : index
    %c0_1 = arith.constant 0 : index
    %1 = vector.load %arg0[%c40, %c0_1] : memref<112x136xbf16, #tpu.memory_space<vmem>>, vector<32x136xbf16>
    %c40_2 = arith.constant 40 : index
    %c128 = arith.constant 128 : index
    %2 = vector.load %arg0[%c40_2, %c128] : memref<112x136xbf16, #tpu.memory_space<vmem>>, vector<32x8xbf16>
    %c72 = arith.constant 72 : index
    %c0_3 = arith.constant 0 : index
    %3 = vector.load %arg0[%c72, %c0_3] : memref<112x136xbf16, #tpu.memory_space<vmem>>, vector<40x128xbf16>
    %c0_4 = arith.constant 0 : index
    %c0_5 = arith.constant 0 : index
    %4 = vector.load %arg1[%c0_4, %c0_5] : memref<60x128xf32, #tpu.memory_space<vmem>>, vector<1x128xf32>
    %c1 = arith.constant 1 : index
    %c0_6 = arith.constant 0 : index
    %5 = vector.load %arg1[%c1, %c0_6] : memref<60x128xf32, #tpu.memory_space<vmem>>, vector<1x128xf32>
    %c2 = arith.constant 2 : index
    %c0_7 = arith.constant 0 : index
    %6 = vector.load %arg1[%c2, %c0_7] : memref<60x128xf32, #tpu.memory_space<vmem>>, vector<1x128xf32>
    %c3 = arith.constant 3 : index
    %c0_8 = arith.constant 0 : index
    %7 = vector.load %arg1[%c3, %c0_8] : memref<60x128xf32, #tpu.memory_space<vmem>>, vector<1x32xf32>
    %c4 = arith.constant 4 : index
    %c0_9 = arith.constant 0 : index
    %8 = vector.load %arg1[%c4, %c0_9] : memref<60x128xf32, #tpu.memory_space<vmem>>, vector<1x32xf32>
    %c5 = arith.constant 5 : index
    %c0_10 = arith.constant 0 : index
    %9 = vector.load %arg1[%c5, %c0_10] : memref<60x128xf32, #tpu.memory_space<vmem>>, vector<1x8xf32>
    %c6 = arith.constant 6 : index
    %c0_11 = arith.constant 0 : index
    %10 = vector.load %arg1[%c6, %c0_11] : memref<60x128xf32, #tpu.memory_space<vmem>>, vector<1x1xf32>
    %c7 = arith.constant 7 : index
    %c0_12 = arith.constant 0 : index
    %11 = vector.load %arg1[%c7, %c0_12] : memref<60x128xf32, #tpu.memory_space<vmem>>, vector<1x32xf32>
    %c8 = arith.constant 8 : index
    %c0_13 = arith.constant 0 : index
    %12 = vector.load %arg1[%c8, %c0_13] : memref<60x128xf32, #tpu.memory_space<vmem>>, vector<32x32xf32>
    %c40_14 = arith.constant 40 : index
    %c0_15 = arith.constant 0 : index
    %13 = vector.load %arg1[%c40_14, %c0_15] : memref<60x128xf32, #tpu.memory_space<vmem>>, vector<16x32xf32>
    %c56 = arith.constant 56 : index
    %c0_16 = arith.constant 0 : index
    %14 = vector.load %arg1[%c56, %c0_16] : memref<60x128xf32, #tpu.memory_space<vmem>>, vector<2x16xf32>
    %c58 = arith.constant 58 : index
    %c0_17 = arith.constant 0 : index
    %15 = vector.load %arg1[%c58, %c0_17] : memref<60x128xf32, #tpu.memory_space<vmem>>, vector<2x64xf32>
    %cst = arith.constant 0.000000e+00 : f32
    %16 = vector.broadcast %cst : f32 to vector<2x128xf32>
    %c0_18 = arith.constant 0 : index
    %c0_19 = arith.constant 0 : index
    %17 = vector.load %arg2[%c0_18, %c0_19] : memref<2x128xf32, #tpu.memory_space<vmem>>, vector<2x128xf32>
    tpu.vector_store %arg2[%c0_18, %c0_19], %16 {strides = array<i32>} : memref<2x128xf32, #tpu.memory_space<vmem>>, vector<2x128xf32>,
    %cst_20 = arith.constant 0.000000e+00 : f32
    %18 = vector.broadcast %cst_20 : f32 to vector<2x32xf32>
    %cst_21 = arith.constant 0.000000e+00 : f32
    %19 = vector.broadcast %cst_21 : f32 to vector<2x32xf32>
    %20 = vector.extract_strided_slice %15 {offsets = [0, 0], sizes = [2, 8], strides = [1, 1]} : vector<2x64xf32> to vector<2x8xf32>
    %21 = tpu.concatenate %20, %18 in 1 : vector<2x8xf32>, vector<2x32xf32> -> vector<2x40xf32>
    %22 = arith.truncf %21 : vector<2x40xf32> to vector<2x40xbf16>
    %cst_22 = arith.constant dense<0.000000e+00> : vector<2x128xf32>
    %23 = tpu.matmul %22, %0, %cst_22 {dimension_numbers = #tpu.dot_dimension_numbers<[1], [0], [0], [1], [0, 0, 1, 1], [], []>} : vector<2x40xbf16>, vector<40x128xbf16>, vector<2x128xf32> -> vector<2x128xf32>
    %24 = vector.broadcast %4 : vector<1x128xf32> to vector<2x128xf32>
    %25 = arith.addf %23, %24 : vector<2x128xf32>
    %26 = arith.negf %25 : vector<2x128xf32>
    %27 = math.exp %26 : vector<2x128xf32>
    %cst_23 = arith.constant 1.000000e+00 : f32
    %28 = vector.broadcast %cst_23 : f32 to vector<2x128xf32>
    %29 = arith.addf %28, %27 : vector<2x128xf32>
    %30 = arith.divf %28, %29 : vector<2x128xf32>
    %31 = math.tanh %25 : vector<2x128xf32>
    %32 = vector.extract_strided_slice %30 {offsets = [0, 0], sizes = [2, 32], strides = [1, 1]} : vector<2x128xf32> to vector<2x32xf32>
    %c96_i32 = arith.constant 96 : i32
    %33 = tpu.dynamic_rotate %30 by %c96_i32 dim 1 : vector<2x128xf32>, i32 -> vector<2x128xf32>
    %34 = vector.extract_strided_slice %33 {offsets = [0, 0], sizes = [2, 32], strides = [1, 1]} : vector<2x128xf32> to vector<2x32xf32>
    %c64_i32 = arith.constant 64 : i32
    %35 = tpu.dynamic_rotate %31 by %c64_i32 dim 1 : vector<2x128xf32>, i32 -> vector<2x128xf32>
    %36 = vector.extract_strided_slice %35 {offsets = [0, 0], sizes = [2, 32], strides = [1, 1]} : vector<2x128xf32> to vector<2x32xf32>
    %c32_i32 = arith.constant 32 : i32
    %37 = tpu.dynamic_rotate %30 by %c32_i32 dim 1 : vector<2x128xf32>, i32 -> vector<2x128xf32>
    %38 = vector.extract_strided_slice %37 {offsets = [0, 0], sizes = [2, 32], strides = [1, 1]} : vector<2x128xf32> to vector<2x32xf32>
    %39 = arith.mulf %34, %19 : vector<2x32xf32>
    %40 = arith.mulf %32, %36 : vector<2x32xf32>
    %41 = arith.addf %39, %40 : vector<2x32xf32>
    %42 = math.tanh %41 : vector<2x32xf32>
    %43 = arith.mulf %38, %42 : vector<2x32xf32>
    %44 = vector.extract_strided_slice %15 {offsets = [0, 8], sizes = [2, 8], strides = [1, 1]} : vector<2x64xf32> to vector<2x8xf32>
    %45 = tpu.concatenate %44, %43 in 1 : vector<2x8xf32>, vector<2x32xf32> -> vector<2x40xf32>
    %46 = arith.truncf %45 : vector<2x40xf32> to vector<2x40xbf16>
    %cst_24 = arith.constant dense<0.000000e+00> : vector<2x128xf32>
    %47 = tpu.matmul %46, %0, %cst_24 {dimension_numbers = #tpu.dot_dimension_numbers<[1], [0], [0], [1], [0, 0, 1, 1], [], []>} : vector<2x40xbf16>, vector<40x128xbf16>, vector<2x128xf32> -> vector<2x128xf32>
    %48 = vector.broadcast %4 : vector<1x128xf32> to vector<2x128xf32>
    %49 = arith.addf %47, %48 : vector<2x128xf32>
    %50 = arith.negf %49 : vector<2x128xf32>
    %51 = math.exp %50 : vector<2x128xf32>
    %cst_25 = arith.constant 1.000000e+00 : f32
    %52 = vector.broadcast %cst_25 : f32 to vector<2x128xf32>
    %53 = arith.addf %52, %51 : vector<2x128xf32>
    %54 = arith.divf %52, %53 : vector<2x128xf32>
    %55 = math.tanh %49 : vector<2x128xf32>
    %56 = vector.extract_strided_slice %54 {offsets = [0, 0], sizes = [2, 32], strides = [1, 1]} : vector<2x128xf32> to vector<2x32xf32>
    %c96_i32_26 = arith.constant 96 : i32
    %57 = tpu.dynamic_rotate %54 by %c96_i32_26 dim 1 : vector<2x128xf32>, i32 -> vector<2x128xf32>
    %58 = vector.extract_strided_slice %57 {offsets = [0, 0], sizes = [2, 32], strides = [1, 1]} : vector<2x128xf32> to vector<2x32xf32>
    %c64_i32_27 = arith.constant 64 : i32
    %59 = tpu.dynamic_rotate %55 by %c64_i32_27 dim 1 : vector<2x128xf32>, i32 -> vector<2x128xf32>
    %60 = vector.extract_strided_slice %59 {offsets = [0, 0], sizes = [2, 32], strides = [1, 1]} : vector<2x128xf32> to vector<2x32xf32>
    %c32_i32_28 = arith.constant 32 : i32
    %61 = tpu.dynamic_rotate %54 by %c32_i32_28 dim 1 : vector<2x128xf32>, i32 -> vector<2x128xf32>
    %62 = vector.extract_strided_slice %61 {offsets = [0, 0], sizes = [2, 32], strides = [1, 1]} : vector<2x128xf32> to vector<2x32xf32>
    %63 = arith.mulf %58, %41 : vector<2x32xf32>
    %64 = arith.mulf %56, %60 : vector<2x32xf32>
    %65 = arith.addf %63, %64 : vector<2x32xf32>
    %66 = math.tanh %65 : vector<2x32xf32>
    %67 = arith.mulf %62, %66 : vector<2x32xf32>
    %68 = vector.extract_strided_slice %15 {offsets = [0, 16], sizes = [2, 8], strides = [1, 1]} : vector<2x64xf32> to vector<2x8xf32>
    %69 = tpu.concatenate %68, %67 in 1 : vector<2x8xf32>, vector<2x32xf32> -> vector<2x40xf32>
    %70 = arith.truncf %69 : vector<2x40xf32> to vector<2x40xbf16>
    %cst_29 = arith.constant dense<0.000000e+00> : vector<2x128xf32>
    %71 = tpu.matmul %70, %0, %cst_29 {dimension_numbers = #tpu.dot_dimension_numbers<[1], [0], [0], [1], [0, 0, 1, 1], [], []>} : vector<2x40xbf16>, vector<40x128xbf16>, vector<2x128xf32> -> vector<2x128xf32>
    %72 = vector.broadcast %4 : vector<1x128xf32> to vector<2x128xf32>
    %73 = arith.addf %71, %72 : vector<2x128xf32>
    %74 = arith.negf %73 : vector<2x128xf32>
    %75 = math.exp %74 : vector<2x128xf32>
    %cst_30 = arith.constant 1.000000e+00 : f32
    %76 = vector.broadcast %cst_30 : f32 to vector<2x128xf32>
    %77 = arith.addf %76, %75 : vector<2x128xf32>
    %78 = arith.divf %76, %77 : vector<2x128xf32>
    %79 = math.tanh %73 : vector<2x128xf32>
    %80 = vector.extract_strided_slice %78 {offsets = [0, 0], sizes = [2, 32], strides = [1, 1]} : vector<2x128xf32> to vector<2x32xf32>
    %c96_i32_31 = arith.constant 96 : i32
    %81 = tpu.dynamic_rotate %78 by %c96_i32_31 dim 1 : vector<2x128xf32>, i32 -> vector<2x128xf32>
    %82 = vector.extract_strided_slice %81 {offsets = [0, 0], sizes = [2, 32], strides = [1, 1]} : vector<2x128xf32> to vector<2x32xf32>
    %c64_i32_32 = arith.constant 64 : i32
    %83 = tpu.dynamic_rotate %79 by %c64_i32_32 dim 1 : vector<2x128xf32>, i32 -> vector<2x128xf32>
    %84 = vector.extract_strided_slice %83 {offsets = [0, 0], sizes = [2, 32], strides = [1, 1]} : vector<2x128xf32> to vector<2x32xf32>
    %c32_i32_33 = arith.constant 32 : i32
    %85 = tpu.dynamic_rotate %78 by %c32_i32_33 dim 1 : vector<2x128xf32>, i32 -> vector<2x128xf32>
    %86 = vector.extract_strided_slice %85 {offsets = [0, 0], sizes = [2, 32], strides = [1, 1]} : vector<2x128xf32> to vector<2x32xf32>
    %87 = arith.mulf %82, %65 : vector<2x32xf32>
    %88 = arith.mulf %80, %84 : vector<2x32xf32>
    %89 = arith.addf %87, %88 : vector<2x32xf32>
    %90 = math.tanh %89 : vector<2x32xf32>
    %91 = arith.mulf %86, %90 : vector<2x32xf32>
    %92 = vector.extract_strided_slice %15 {offsets = [0, 24], sizes = [2, 8], strides = [1, 1]} : vector<2x64xf32> to vector<2x8xf32>
    %93 = tpu.concatenate %92, %91 in 1 : vector<2x8xf32>, vector<2x32xf32> -> vector<2x40xf32>
    %94 = arith.truncf %93 : vector<2x40xf32> to vector<2x40xbf16>
    %cst_34 = arith.constant dense<0.000000e+00> : vector<2x128xf32>
    %95 = tpu.matmul %94, %0, %cst_34 {dimension_numbers = #tpu.dot_dimension_numbers<[1], [0], [0], [1], [0, 0, 1, 1], [], []>} : vector<2x40xbf16>, vector<40x128xbf16>, vector<2x128xf32> -> vector<2x128xf32>
    %96 = vector.broadcast %4 : vector<1x128xf32> to vector<2x128xf32>
    %97 = arith.addf %95, %96 : vector<2x128xf32>
    %98 = arith.negf %97 : vector<2x128xf32>
    %99 = math.exp %98 : vector<2x128xf32>
    %cst_35 = arith.constant 1.000000e+00 : f32
    %100 = vector.broadcast %cst_35 : f32 to vector<2x128xf32>
    %101 = arith.addf %100, %99 : vector<2x128xf32>
    %102 = arith.divf %100, %101 : vector<2x128xf32>
    %103 = math.tanh %97 : vector<2x128xf32>
    %104 = vector.extract_strided_slice %102 {offsets = [0, 0], sizes = [2, 32], strides = [1, 1]} : vector<2x128xf32> to vector<2x32xf32>
    %c96_i32_36 = arith.constant 96 : i32
    %105 = tpu.dynamic_rotate %102 by %c96_i32_36 dim 1 : vector<2x128xf32>, i32 -> vector<2x128xf32>
    %106 = vector.extract_strided_slice %105 {offsets = [0, 0], sizes = [2, 32], strides = [1, 1]} : vector<2x128xf32> to vector<2x32xf32>
    %c64_i32_37 = arith.constant 64 : i32
    %107 = tpu.dynamic_rotate %103 by %c64_i32_37 dim 1 : vector<2x128xf32>, i32 -> vector<2x128xf32>
    %108 = vector.extract_strided_slice %107 {offsets = [0, 0], sizes = [2, 32], strides = [1, 1]} : vector<2x128xf32> to vector<2x32xf32>
    %c32_i32_38 = arith.constant 32 : i32
    %109 = tpu.dynamic_rotate %102 by %c32_i32_38 dim 1 : vector<2x128xf32>, i32 -> vector<2x128xf32>
    %110 = vector.extract_strided_slice %109 {offsets = [0, 0], sizes = [2, 32], strides = [1, 1]} : vector<2x128xf32> to vector<2x32xf32>
    %111 = arith.mulf %106, %89 : vector<2x32xf32>
    %112 = arith.mulf %104, %108 : vector<2x32xf32>
    %113 = arith.addf %111, %112 : vector<2x32xf32>
    %114 = math.tanh %113 : vector<2x32xf32>
    %115 = arith.mulf %110, %114 : vector<2x32xf32>
    %116 = vector.extract_strided_slice %15 {offsets = [0, 32], sizes = [2, 8], strides = [1, 1]} : vector<2x64xf32> to vector<2x8xf32>
    %117 = tpu.concatenate %116, %115 in 1 : vector<2x8xf32>, vector<2x32xf32> -> vector<2x40xf32>
    %118 = arith.truncf %117 : vector<2x40xf32> to vector<2x40xbf16>
    %cst_39 = arith.constant dense<0.000000e+00> : vector<2x128xf32>
    %119 = tpu.matmul %118, %0, %cst_39 {dimension_numbers = #tpu.dot_dimension_numbers<[1], [0], [0], [1], [0, 0, 1, 1], [], []>} : vector<2x40xbf16>, vector<40x128xbf16>, vector<2x128xf32> -> vector<2x128xf32>
    %120 = vector.broadcast %4 : vector<1x128xf32> to vector<2x128xf32>
    %121 = arith.addf %119, %120 : vector<2x128xf32>
    %122 = arith.negf %121 : vector<2x128xf32>
    %123 = math.exp %122 : vector<2x128xf32>
    %cst_40 = arith.constant 1.000000e+00 : f32
    %124 = vector.broadcast %cst_40 : f32 to vector<2x128xf32>
    %125 = arith.addf %124, %123 : vector<2x128xf32>
    %126 = arith.divf %124, %125 : vector<2x128xf32>
    %127 = math.tanh %121 : vector<2x128xf32>
    %128 = vector.extract_strided_slice %126 {offsets = [0, 0], sizes = [2, 32], strides = [1, 1]} : vector<2x128xf32> to vector<2x32xf32>
    %c96_i32_41 = arith.constant 96 : i32
    %129 = tpu.dynamic_rotate %126 by %c96_i32_41 dim 1 : vector<2x128xf32>, i32 -> vector<2x128xf32>
    %130 = vector.extract_strided_slice %129 {offsets = [0, 0], sizes = [2, 32], strides = [1, 1]} : vector<2x128xf32> to vector<2x32xf32>
    %c64_i32_42 = arith.constant 64 : i32
    %131 = tpu.dynamic_rotate %127 by %c64_i32_42 dim 1 : vector<2x128xf32>, i32 -> vector<2x128xf32>
    %132 = vector.extract_strided_slice %131 {offsets = [0, 0], sizes = [2, 32], strides = [1, 1]} : vector<2x128xf32> to vector<2x32xf32>
    %c32_i32_43 = arith.constant 32 : i32
    %133 = tpu.dynamic_rotate %126 by %c32_i32_43 dim 1 : vector<2x128xf32>, i32 -> vector<2x128xf32>
    %134 = vector.extract_strided_slice %133 {offsets = [0, 0], sizes = [2, 32], strides = [1, 1]} : vector<2x128xf32> to vector<2x32xf32>
    %135 = arith.mulf %130, %113 : vector<2x32xf32>
    %136 = arith.mulf %128, %132 : vector<2x32xf32>
    %137 = arith.addf %135, %136 : vector<2x32xf32>
    %138 = math.tanh %137 : vector<2x32xf32>
    %139 = arith.mulf %134, %138 : vector<2x32xf32>
    %140 = vector.extract_strided_slice %15 {offsets = [0, 40], sizes = [2, 8], strides = [1, 1]} : vector<2x64xf32> to vector<2x8xf32>
    %141 = tpu.concatenate %140, %139 in 1 : vector<2x8xf32>, vector<2x32xf32> -> vector<2x40xf32>
    %142 = arith.truncf %141 : vector<2x40xf32> to vector<2x40xbf16>
    %cst_44 = arith.constant dense<0.000000e+00> : vector<2x128xf32>
    %143 = tpu.matmul %142, %0, %cst_44 {dimension_numbers = #tpu.dot_dimension_numbers<[1], [0], [0], [1], [0, 0, 1, 1], [], []>} : vector<2x40xbf16>, vector<40x128xbf16>, vector<2x128xf32> -> vector<2x128xf32>
    %144 = vector.broadcast %4 : vector<1x128xf32> to vector<2x128xf32>
    %145 = arith.addf %143, %144 : vector<2x128xf32>
    %146 = arith.negf %145 : vector<2x128xf32>
    %147 = math.exp %146 : vector<2x128xf32>
    %cst_45 = arith.constant 1.000000e+00 : f32
    %148 = vector.broadcast %cst_45 : f32 to vector<2x128xf32>
    %149 = arith.addf %148, %147 : vector<2x128xf32>
    %150 = arith.divf %148, %149 : vector<2x128xf32>
    %151 = math.tanh %145 : vector<2x128xf32>
    %152 = vector.extract_strided_slice %150 {offsets = [0, 0], sizes = [2, 32], strides = [1, 1]} : vector<2x128xf32> to vector<2x32xf32>
    %c96_i32_46 = arith.constant 96 : i32
    %153 = tpu.dynamic_rotate %150 by %c96_i32_46 dim 1 : vector<2x128xf32>, i32 -> vector<2x128xf32>
    %154 = vector.extract_strided_slice %153 {offsets = [0, 0], sizes = [2, 32], strides = [1, 1]} : vector<2x128xf32> to vector<2x32xf32>
    %c64_i32_47 = arith.constant 64 : i32
    %155 = tpu.dynamic_rotate %151 by %c64_i32_47 dim 1 : vector<2x128xf32>, i32 -> vector<2x128xf32>
    %156 = vector.extract_strided_slice %155 {offsets = [0, 0], sizes = [2, 32], strides = [1, 1]} : vector<2x128xf32> to vector<2x32xf32>
    %c32_i32_48 = arith.constant 32 : i32
    %157 = tpu.dynamic_rotate %150 by %c32_i32_48 dim 1 : vector<2x128xf32>, i32 -> vector<2x128xf32>
    %158 = vector.extract_strided_slice %157 {offsets = [0, 0], sizes = [2, 32], strides = [1, 1]} : vector<2x128xf32> to vector<2x32xf32>
    %159 = arith.mulf %154, %137 : vector<2x32xf32>
    %160 = arith.mulf %152, %156 : vector<2x32xf32>
    %161 = arith.addf %159, %160 : vector<2x32xf32>
    %162 = math.tanh %161 : vector<2x32xf32>
    %163 = arith.mulf %158, %162 : vector<2x32xf32>
    %164 = vector.extract_strided_slice %15 {offsets = [0, 48], sizes = [2, 8], strides = [1, 1]} : vector<2x64xf32> to vector<2x8xf32>
    %165 = tpu.concatenate %164, %163 in 1 : vector<2x8xf32>, vector<2x32xf32> -> vector<2x40xf32>
    %166 = arith.truncf %165 : vector<2x40xf32> to vector<2x40xbf16>
    %cst_49 = arith.constant dense<0.000000e+00> : vector<2x128xf32>
    %167 = tpu.matmul %166, %0, %cst_49 {dimension_numbers = #tpu.dot_dimension_numbers<[1], [0], [0], [1], [0, 0, 1, 1], [], []>} : vector<2x40xbf16>, vector<40x128xbf16>, vector<2x128xf32> -> vector<2x128xf32>
    %168 = vector.broadcast %4 : vector<1x128xf32> to vector<2x128xf32>
    %169 = arith.addf %167, %168 : vector<2x128xf32>
    %170 = arith.negf %169 : vector<2x128xf32>
    %171 = math.exp %170 : vector<2x128xf32>
    %cst_50 = arith.constant 1.000000e+00 : f32
    %172 = vector.broadcast %cst_50 : f32 to vector<2x128xf32>
    %173 = arith.addf %172, %171 : vector<2x128xf32>
    %174 = arith.divf %172, %173 : vector<2x128xf32>
    %175 = math.tanh %169 : vector<2x128xf32>
    %176 = vector.extract_strided_slice %174 {offsets = [0, 0], sizes = [2, 32], strides = [1, 1]} : vector<2x128xf32> to vector<2x32xf32>
    %c96_i32_51 = arith.constant 96 : i32
    %177 = tpu.dynamic_rotate %174 by %c96_i32_51 dim 1 : vector<2x128xf32>, i32 -> vector<2x128xf32>
    %178 = vector.extract_strided_slice %177 {offsets = [0, 0], sizes = [2, 32], strides = [1, 1]} : vector<2x128xf32> to vector<2x32xf32>
    %c64_i32_52 = arith.constant 64 : i32
    %179 = tpu.dynamic_rotate %175 by %c64_i32_52 dim 1 : vector<2x128xf32>, i32 -> vector<2x128xf32>
    %180 = vector.extract_strided_slice %179 {offsets = [0, 0], sizes = [2, 32], strides = [1, 1]} : vector<2x128xf32> to vector<2x32xf32>
    %c32_i32_53 = arith.constant 32 : i32
    %181 = tpu.dynamic_rotate %174 by %c32_i32_53 dim 1 : vector<2x128xf32>, i32 -> vector<2x128xf32>
    %182 = vector.extract_strided_slice %181 {offsets = [0, 0], sizes = [2, 32], strides = [1, 1]} : vector<2x128xf32> to vector<2x32xf32>
    %183 = arith.mulf %178, %161 : vector<2x32xf32>
    %184 = arith.mulf %176, %180 : vector<2x32xf32>
    %185 = arith.addf %183, %184 : vector<2x32xf32>
    %186 = math.tanh %185 : vector<2x32xf32>
    %187 = arith.mulf %182, %186 : vector<2x32xf32>
    %188 = vector.extract_strided_slice %15 {offsets = [0, 56], sizes = [2, 8], strides = [1, 1]} : vector<2x64xf32> to vector<2x8xf32>
    %189 = tpu.concatenate %188, %187 in 1 : vector<2x8xf32>, vector<2x32xf32> -> vector<2x40xf32>
    %190 = arith.truncf %189 : vector<2x40xf32> to vector<2x40xbf16>
    %cst_54 = arith.constant dense<0.000000e+00> : vector<2x128xf32>
    %191 = tpu.matmul %190, %0, %cst_54 {dimension_numbers = #tpu.dot_dimension_numbers<[1], [0], [0], [1], [0, 0, 1, 1], [], []>} : vector<2x40xbf16>, vector<40x128xbf16>, vector<2x128xf32> -> vector<2x128xf32>
    %192 = vector.broadcast %4 : vector<1x128xf32> to vector<2x128xf32>
    %193 = arith.addf %191, %192 : vector<2x128xf32>
    %194 = arith.negf %193 : vector<2x128xf32>
    %195 = math.exp %194 : vector<2x128xf32>
    %cst_55 = arith.constant 1.000000e+00 : f32
    %196 = vector.broadcast %cst_55 : f32 to vector<2x128xf32>
    %197 = arith.addf %196, %195 : vector<2x128xf32>
    %198 = arith.divf %196, %197 : vector<2x128xf32>
    %199 = math.tanh %193 : vector<2x128xf32>
    %200 = vector.extract_strided_slice %198 {offsets = [0, 0], sizes = [2, 32], strides = [1, 1]} : vector<2x128xf32> to vector<2x32xf32>
    %c96_i32_56 = arith.constant 96 : i32
    %201 = tpu.dynamic_rotate %198 by %c96_i32_56 dim 1 : vector<2x128xf32>, i32 -> vector<2x128xf32>
    %202 = vector.extract_strided_slice %201 {offsets = [0, 0], sizes = [2, 32], strides = [1, 1]} : vector<2x128xf32> to vector<2x32xf32>
    %c64_i32_57 = arith.constant 64 : i32
    %203 = tpu.dynamic_rotate %199 by %c64_i32_57 dim 1 : vector<2x128xf32>, i32 -> vector<2x128xf32>
    %204 = vector.extract_strided_slice %203 {offsets = [0, 0], sizes = [2, 32], strides = [1, 1]} : vector<2x128xf32> to vector<2x32xf32>
    %c32_i32_58 = arith.constant 32 : i32
    %205 = tpu.dynamic_rotate %198 by %c32_i32_58 dim 1 : vector<2x128xf32>, i32 -> vector<2x128xf32>
    %206 = vector.extract_strided_slice %205 {offsets = [0, 0], sizes = [2, 32], strides = [1, 1]} : vector<2x128xf32> to vector<2x32xf32>
    %207 = arith.mulf %202, %185 : vector<2x32xf32>
    %208 = arith.mulf %200, %204 : vector<2x32xf32>
    %209 = arith.addf %207, %208 : vector<2x32xf32>
    %210 = math.tanh %209 : vector<2x32xf32>
    %211 = arith.mulf %206, %210 : vector<2x32xf32>
    %cst_59 = arith.constant dense<0.000000e+00> : vector<2x32xf32>
    %212 = tpu.matmul %211, %12, %cst_59 {dimension_numbers = #tpu.dot_dimension_numbers<[1], [0], [0], [1], [0, 0, 1, 1], [], []>} : vector<2x32xf32>, vector<32x32xf32>, vector<2x32xf32> -> vector<2x32xf32>
    %213 = vector.broadcast %7 : vector<1x32xf32> to vector<2x32xf32>
    %214 = arith.addf %212, %213 : vector<2x32xf32>
    %215 = vector.extract_strided_slice %214 {offsets = [0, 0], sizes = [2, 16], strides = [1, 1]} : vector<2x32xf32> to vector<2x16xf32>
    %216 = vector.extract_strided_slice %214 {offsets = [0, 16], sizes = [2, 16], strides = [1, 1]} : vector<2x32xf32> to vector<2x16xf32>
    %cst_60 = arith.constant 5.000000e-01 : f32
    %217 = vector.broadcast %cst_60 : f32 to vector<2x16xf32>
    %218 = arith.mulf %217, %216 : vector<2x16xf32>
    %219 = math.exp %218 : vector<2x16xf32>
    %220 = arith.mulf %219, %14 : vector<2x16xf32>
    %221 = arith.addf %215, %220 : vector<2x16xf32>
    %cst_61 = arith.constant dense<0.000000e+00> : vector<2x32xf32>
    %222 = tpu.matmul %221, %13, %cst_61 {dimension_numbers = #tpu.dot_dimension_numbers<[1], [0], [0], [1], [0, 0, 1, 1], [], []>} : vector<2x16xf32>, vector<16x32xf32>, vector<2x32xf32> -> vector<2x32xf32>
    %223 = vector.broadcast %8 : vector<1x32xf32> to vector<2x32xf32>
    %224 = arith.addf %222, %223 : vector<2x32xf32>
    %cst_62 = arith.constant 0.000000e+00 : f32
    %225 = vector.broadcast %cst_62 : f32 to vector<2x32xf32>
    %cst_63 = arith.constant 0.000000e+00 : f32
    %226 = vector.broadcast %cst_63 : f32 to vector<2x32xf32>
    %cst_64 = arith.constant 0.000000e+00 : f32
    %227 = vector.broadcast %cst_64 : f32 to vector<2x32xf32>
    %228 = arith.truncf %224 : vector<2x32xf32> to vector<2x32xbf16>
    %cst_65 = arith.constant dense<0.000000e+00> : vector<2x136xf32>
    %229 = tpu.matmul %228, %1, %cst_65 {dimension_numbers = #tpu.dot_dimension_numbers<[1], [0], [0], [1], [0, 0, 1, 1], [], []>} : vector<2x32xbf16>, vector<32x136xbf16>, vector<2x136xf32> -> vector<2x136xf32>
    %230 = vector.extract_strided_slice %229 {offsets = [0, 0], sizes = [2, 128], strides = [1, 1]} : vector<2x136xf32> to vector<2x128xf32>
    %231 = vector.broadcast %5 : vector<1x128xf32> to vector<2x128xf32>
    %232 = arith.addf %230, %231 : vector<2x128xf32>
    %233 = arith.negf %232 : vector<2x128xf32>
    %234 = math.exp %233 : vector<2x128xf32>
    %cst_66 = arith.constant 1.000000e+00 : f32
    %235 = vector.broadcast %cst_66 : f32 to vector<2x128xf32>
    %236 = arith.addf %235, %234 : vector<2x128xf32>
    %237 = arith.divf %235, %236 : vector<2x128xf32>
    %238 = math.tanh %232 : vector<2x128xf32>
    %239 = vector.extract_strided_slice %237 {offsets = [0, 0], sizes = [2, 32], strides = [1, 1]} : vector<2x128xf32> to vector<2x32xf32>
    %c96_i32_67 = arith.constant 96 : i32
    %240 = tpu.dynamic_rotate %237 by %c96_i32_67 dim 1 : vector<2x128xf32>, i32 -> vector<2x128xf32>
    %241 = vector.extract_strided_slice %240 {offsets = [0, 0], sizes = [2, 32], strides = [1, 1]} : vector<2x128xf32> to vector<2x32xf32>
    %c64_i32_68 = arith.constant 64 : i32
    %242 = tpu.dynamic_rotate %238 by %c64_i32_68 dim 1 : vector<2x128xf32>, i32 -> vector<2x128xf32>
    %243 = vector.extract_strided_slice %242 {offsets = [0, 0], sizes = [2, 32], strides = [1, 1]} : vector<2x128xf32> to vector<2x32xf32>
    %c32_i32_69 = arith.constant 32 : i32
    %244 = tpu.dynamic_rotate %237 by %c32_i32_69 dim 1 : vector<2x128xf32>, i32 -> vector<2x128xf32>
    %245 = vector.extract_strided_slice %244 {offsets = [0, 0], sizes = [2, 32], strides = [1, 1]} : vector<2x128xf32> to vector<2x32xf32>
    %246 = arith.mulf %241, %225 : vector<2x32xf32>
    %247 = arith.mulf %239, %243 : vector<2x32xf32>
    %248 = arith.addf %246, %247 : vector<2x32xf32>
    %249 = math.tanh %248 : vector<2x32xf32>
    %250 = arith.mulf %245, %249 : vector<2x32xf32>
    %251 = arith.truncf %250 : vector<2x32xf32> to vector<2x32xbf16>
    %cst_70 = arith.constant dense<0.000000e+00> : vector<2x136xf32>
    %252 = tpu.matmul %251, %1, %cst_70 {dimension_numbers = #tpu.dot_dimension_numbers<[1], [0], [0], [1], [0, 0, 1, 1], [], []>} : vector<2x32xbf16>, vector<32x136xbf16>, vector<2x136xf32> -> vector<2x136xf32>
    %253 = vector.extract_strided_slice %252 {offsets = [0, 128], sizes = [2, 8], strides = [1, 1]} : vector<2x136xf32> to vector<2x8xf32>
    %254 = vector.broadcast %9 : vector<1x8xf32> to vector<2x8xf32>
    %255 = arith.addf %253, %254 : vector<2x8xf32>
    %c0_71 = arith.constant 0 : index
    %c0_72 = arith.constant 0 : index
    %256 = vector.load %arg2[%c0_71, %c0_72] : memref<2x128xf32, #tpu.memory_space<vmem>>, vector<2x8xf32>
    tpu.vector_store %arg2[%c0_71, %c0_72], %255 {strides = array<i32>} : memref<2x128xf32, #tpu.memory_space<vmem>>, vector<2x8xf32>,
    %257 = tpu.concatenate %255, %226 in 1 : vector<2x8xf32>, vector<2x32xf32> -> vector<2x40xf32>
    %258 = arith.truncf %257 : vector<2x40xf32> to vector<2x40xbf16>
    %cst_73 = arith.constant dense<0.000000e+00> : vector<2x128xf32>
    %259 = tpu.matmul %258, %3, %cst_73 {dimension_numbers = #tpu.dot_dimension_numbers<[1], [0], [0], [1], [0, 0, 1, 1], [], []>} : vector<2x40xbf16>, vector<40x128xbf16>, vector<2x128xf32> -> vector<2x128xf32>
    %260 = vector.broadcast %6 : vector<1x128xf32> to vector<2x128xf32>
    %261 = arith.addf %259, %260 : vector<2x128xf32>
    %262 = arith.negf %261 : vector<2x128xf32>
    %263 = math.exp %262 : vector<2x128xf32>
    %cst_74 = arith.constant 1.000000e+00 : f32
    %264 = vector.broadcast %cst_74 : f32 to vector<2x128xf32>
    %265 = arith.addf %264, %263 : vector<2x128xf32>
    %266 = arith.divf %264, %265 : vector<2x128xf32>
    %267 = math.tanh %261 : vector<2x128xf32>
    %268 = vector.extract_strided_slice %266 {offsets = [0, 0], sizes = [2, 32], strides = [1, 1]} : vector<2x128xf32> to vector<2x32xf32>
    %c96_i32_75 = arith.constant 96 : i32
    %269 = tpu.dynamic_rotate %266 by %c96_i32_75 dim 1 : vector<2x128xf32>, i32 -> vector<2x128xf32>
    %270 = vector.extract_strided_slice %269 {offsets = [0, 0], sizes = [2, 32], strides = [1, 1]} : vector<2x128xf32> to vector<2x32xf32>
    %c64_i32_76 = arith.constant 64 : i32
    %271 = tpu.dynamic_rotate %267 by %c64_i32_76 dim 1 : vector<2x128xf32>, i32 -> vector<2x128xf32>
    %272 = vector.extract_strided_slice %271 {offsets = [0, 0], sizes = [2, 32], strides = [1, 1]} : vector<2x128xf32> to vector<2x32xf32>
    %c32_i32_77 = arith.constant 32 : i32
    %273 = tpu.dynamic_rotate %266 by %c32_i32_77 dim 1 : vector<2x128xf32>, i32 -> vector<2x128xf32>
    %274 = vector.extract_strided_slice %273 {offsets = [0, 0], sizes = [2, 32], strides = [1, 1]} : vector<2x128xf32> to vector<2x32xf32>
    %275 = arith.mulf %270, %227 : vector<2x32xf32>
    %276 = arith.mulf %268, %272 : vector<2x32xf32>
    %277 = arith.addf %275, %276 : vector<2x32xf32>
    %278 = math.tanh %277 : vector<2x32xf32>
    %279 = arith.mulf %274, %278 : vector<2x32xf32>
    %280 = vector.extract_strided_slice %252 {offsets = [0, 0], sizes = [2, 128], strides = [1, 1]} : vector<2x136xf32> to vector<2x128xf32>
    %281 = vector.broadcast %5 : vector<1x128xf32> to vector<2x128xf32>
    %282 = arith.addf %280, %281 : vector<2x128xf32>
    %283 = arith.negf %282 : vector<2x128xf32>
    %284 = math.exp %283 : vector<2x128xf32>
    %cst_78 = arith.constant 1.000000e+00 : f32
    %285 = vector.broadcast %cst_78 : f32 to vector<2x128xf32>
    %286 = arith.addf %285, %284 : vector<2x128xf32>
    %287 = arith.divf %285, %286 : vector<2x128xf32>
    %288 = math.tanh %282 : vector<2x128xf32>
    %289 = vector.extract_strided_slice %287 {offsets = [0, 0], sizes = [2, 32], strides = [1, 1]} : vector<2x128xf32> to vector<2x32xf32>
    %c96_i32_79 = arith.constant 96 : i32
    %290 = tpu.dynamic_rotate %287 by %c96_i32_79 dim 1 : vector<2x128xf32>, i32 -> vector<2x128xf32>
    %291 = vector.extract_strided_slice %290 {offsets = [0, 0], sizes = [2, 32], strides = [1, 1]} : vector<2x128xf32> to vector<2x32xf32>
    %c64_i32_80 = arith.constant 64 : i32
    %292 = tpu.dynamic_rotate %288 by %c64_i32_80 dim 1 : vector<2x128xf32>, i32 -> vector<2x128xf32>
    %293 = vector.extract_strided_slice %292 {offsets = [0, 0], sizes = [2, 32], strides = [1, 1]} : vector<2x128xf32> to vector<2x32xf32>
    %c32_i32_81 = arith.constant 32 : i32
    %294 = tpu.dynamic_rotate %287 by %c32_i32_81 dim 1 : vector<2x128xf32>, i32 -> vector<2x128xf32>
    %295 = vector.extract_strided_slice %294 {offsets = [0, 0], sizes = [2, 32], strides = [1, 1]} : vector<2x128xf32> to vector<2x32xf32>
    %296 = arith.mulf %291, %248 : vector<2x32xf32>
    %297 = arith.mulf %289, %293 : vector<2x32xf32>
    %298 = arith.addf %296, %297 : vector<2x32xf32>
    %299 = math.tanh %298 : vector<2x32xf32>
    %300 = arith.mulf %295, %299 : vector<2x32xf32>
    %301 = arith.truncf %300 : vector<2x32xf32> to vector<2x32xbf16>
    %cst_82 = arith.constant dense<0.000000e+00> : vector<2x136xf32>
    %302 = tpu.matmul %301, %1, %cst_82 {dimension_numbers = #tpu.dot_dimension_numbers<[1], [0], [0], [1], [0, 0, 1, 1], [], []>} : vector<2x32xbf16>, vector<32x136xbf16>, vector<2x136xf32> -> vector<2x136xf32>
    %303 = vector.extract_strided_slice %302 {offsets = [0, 128], sizes = [2, 8], strides = [1, 1]} : vector<2x136xf32> to vector<2x8xf32>
    %304 = vector.broadcast %9 : vector<1x8xf32> to vector<2x8xf32>
    %305 = arith.addf %303, %304 : vector<2x8xf32>
    %c0_83 = arith.constant 0 : index
    %c8_84 = arith.constant 8 : index
    %306 = vector.load %arg2[%c0_83, %c8_84] : memref<2x128xf32, #tpu.memory_space<vmem>>, vector<2x8xf32>
    tpu.vector_store %arg2[%c0_83, %c8_84], %305 {strides = array<i32>} : memref<2x128xf32, #tpu.memory_space<vmem>>, vector<2x8xf32>,
    %307 = tpu.concatenate %305, %279 in 1 : vector<2x8xf32>, vector<2x32xf32> -> vector<2x40xf32>
    %308 = arith.truncf %307 : vector<2x40xf32> to vector<2x40xbf16>
    %cst_85 = arith.constant dense<0.000000e+00> : vector<2x128xf32>
    %309 = tpu.matmul %308, %3, %cst_85 {dimension_numbers = #tpu.dot_dimension_numbers<[1], [0], [0], [1], [0, 0, 1, 1], [], []>} : vector<2x40xbf16>, vector<40x128xbf16>, vector<2x128xf32> -> vector<2x128xf32>
    %310 = vector.broadcast %6 : vector<1x128xf32> to vector<2x128xf32>
    %311 = arith.addf %309, %310 : vector<2x128xf32>
    %312 = arith.negf %311 : vector<2x128xf32>
    %313 = math.exp %312 : vector<2x128xf32>
    %cst_86 = arith.constant 1.000000e+00 : f32
    %314 = vector.broadcast %cst_86 : f32 to vector<2x128xf32>
    %315 = arith.addf %314, %313 : vector<2x128xf32>
    %316 = arith.divf %314, %315 : vector<2x128xf32>
    %317 = math.tanh %311 : vector<2x128xf32>
    %318 = vector.extract_strided_slice %316 {offsets = [0, 0], sizes = [2, 32], strides = [1, 1]} : vector<2x128xf32> to vector<2x32xf32>
    %c96_i32_87 = arith.constant 96 : i32
    %319 = tpu.dynamic_rotate %316 by %c96_i32_87 dim 1 : vector<2x128xf32>, i32 -> vector<2x128xf32>
    %320 = vector.extract_strided_slice %319 {offsets = [0, 0], sizes = [2, 32], strides = [1, 1]} : vector<2x128xf32> to vector<2x32xf32>
    %c64_i32_88 = arith.constant 64 : i32
    %321 = tpu.dynamic_rotate %317 by %c64_i32_88 dim 1 : vector<2x128xf32>, i32 -> vector<2x128xf32>
    %322 = vector.extract_strided_slice %321 {offsets = [0, 0], sizes = [2, 32], strides = [1, 1]} : vector<2x128xf32> to vector<2x32xf32>
    %c32_i32_89 = arith.constant 32 : i32
    %323 = tpu.dynamic_rotate %316 by %c32_i32_89 dim 1 : vector<2x128xf32>, i32 -> vector<2x128xf32>
    %324 = vector.extract_strided_slice %323 {offsets = [0, 0], sizes = [2, 32], strides = [1, 1]} : vector<2x128xf32> to vector<2x32xf32>
    %325 = arith.mulf %320, %277 : vector<2x32xf32>
    %326 = arith.mulf %318, %322 : vector<2x32xf32>
    %327 = arith.addf %325, %326 : vector<2x32xf32>
    %328 = math.tanh %327 : vector<2x32xf32>
    %329 = arith.mulf %324, %328 : vector<2x32xf32>
    %330 = vector.extract_strided_slice %302 {offsets = [0, 0], sizes = [2, 128], strides = [1, 1]} : vector<2x136xf32> to vector<2x128xf32>
    %331 = vector.broadcast %5 : vector<1x128xf32> to vector<2x128xf32>
    %332 = arith.addf %330, %331 : vector<2x128xf32>
    %333 = arith.negf %332 : vector<2x128xf32>
    %334 = math.exp %333 : vector<2x128xf32>
    %cst_90 = arith.constant 1.000000e+00 : f32
    %335 = vector.broadcast %cst_90 : f32 to vector<2x128xf32>
    %336 = arith.addf %335, %334 : vector<2x128xf32>
    %337 = arith.divf %335, %336 : vector<2x128xf32>
    %338 = math.tanh %332 : vector<2x128xf32>
    %339 = vector.extract_strided_slice %337 {offsets = [0, 0], sizes = [2, 32], strides = [1, 1]} : vector<2x128xf32> to vector<2x32xf32>
    %c96_i32_91 = arith.constant 96 : i32
    %340 = tpu.dynamic_rotate %337 by %c96_i32_91 dim 1 : vector<2x128xf32>, i32 -> vector<2x128xf32>
    %341 = vector.extract_strided_slice %340 {offsets = [0, 0], sizes = [2, 32], strides = [1, 1]} : vector<2x128xf32> to vector<2x32xf32>
    %c64_i32_92 = arith.constant 64 : i32
    %342 = tpu.dynamic_rotate %338 by %c64_i32_92 dim 1 : vector<2x128xf32>, i32 -> vector<2x128xf32>
    %343 = vector.extract_strided_slice %342 {offsets = [0, 0], sizes = [2, 32], strides = [1, 1]} : vector<2x128xf32> to vector<2x32xf32>
    %c32_i32_93 = arith.constant 32 : i32
    %344 = tpu.dynamic_rotate %337 by %c32_i32_93 dim 1 : vector<2x128xf32>, i32 -> vector<2x128xf32>
    %345 = vector.extract_strided_slice %344 {offsets = [0, 0], sizes = [2, 32], strides = [1, 1]} : vector<2x128xf32> to vector<2x32xf32>
    %346 = arith.mulf %341, %298 : vector<2x32xf32>
    %347 = arith.mulf %339, %343 : vector<2x32xf32>
    %348 = arith.addf %346, %347 : vector<2x32xf32>
    %349 = math.tanh %348 : vector<2x32xf32>
    %350 = arith.mulf %345, %349 : vector<2x32xf32>
    %351 = arith.truncf %350 : vector<2x32xf32> to vector<2x32xbf16>
    %cst_94 = arith.constant dense<0.000000e+00> : vector<2x136xf32>
    %352 = tpu.matmul %351, %1, %cst_94 {dimension_numbers = #tpu.dot_dimension_numbers<[1], [0], [0], [1], [0, 0, 1, 1], [], []>} : vector<2x32xbf16>, vector<32x136xbf16>, vector<2x136xf32> -> vector<2x136xf32>
    %353 = vector.extract_strided_slice %352 {offsets = [0, 128], sizes = [2, 8], strides = [1, 1]} : vector<2x136xf32> to vector<2x8xf32>
    %354 = vector.broadcast %9 : vector<1x8xf32> to vector<2x8xf32>
    %355 = arith.addf %353, %354 : vector<2x8xf32>
    %c0_95 = arith.constant 0 : index
    %c16 = arith.constant 16 : index
    %356 = vector.load %arg2[%c0_95, %c16] : memref<2x128xf32, #tpu.memory_space<vmem>>, vector<2x8xf32>
    tpu.vector_store %arg2[%c0_95, %c16], %355 {strides = array<i32>} : memref<2x128xf32, #tpu.memory_space<vmem>>, vector<2x8xf32>,
    %357 = tpu.concatenate %355, %329 in 1 : vector<2x8xf32>, vector<2x32xf32> -> vector<2x40xf32>
    %358 = arith.truncf %357 : vector<2x40xf32> to vector<2x40xbf16>
    %cst_96 = arith.constant dense<0.000000e+00> : vector<2x128xf32>
    %359 = tpu.matmul %358, %3, %cst_96 {dimension_numbers = #tpu.dot_dimension_numbers<[1], [0], [0], [1], [0, 0, 1, 1], [], []>} : vector<2x40xbf16>, vector<40x128xbf16>, vector<2x128xf32> -> vector<2x128xf32>
    %360 = vector.broadcast %6 : vector<1x128xf32> to vector<2x128xf32>
    %361 = arith.addf %359, %360 : vector<2x128xf32>
    %362 = arith.negf %361 : vector<2x128xf32>
    %363 = math.exp %362 : vector<2x128xf32>
    %cst_97 = arith.constant 1.000000e+00 : f32
    %364 = vector.broadcast %cst_97 : f32 to vector<2x128xf32>
    %365 = arith.addf %364, %363 : vector<2x128xf32>
    %366 = arith.divf %364, %365 : vector<2x128xf32>
    %367 = math.tanh %361 : vector<2x128xf32>
    %368 = vector.extract_strided_slice %366 {offsets = [0, 0], sizes = [2, 32], strides = [1, 1]} : vector<2x128xf32> to vector<2x32xf32>
    %c96_i32_98 = arith.constant 96 : i32
    %369 = tpu.dynamic_rotate %366 by %c96_i32_98 dim 1 : vector<2x128xf32>, i32 -> vector<2x128xf32>
    %370 = vector.extract_strided_slice %369 {offsets = [0, 0], sizes = [2, 32], strides = [1, 1]} : vector<2x128xf32> to vector<2x32xf32>
    %c64_i32_99 = arith.constant 64 : i32
    %371 = tpu.dynamic_rotate %367 by %c64_i32_99 dim 1 : vector<2x128xf32>, i32 -> vector<2x128xf32>
    %372 = vector.extract_strided_slice %371 {offsets = [0, 0], sizes = [2, 32], strides = [1, 1]} : vector<2x128xf32> to vector<2x32xf32>
    %c32_i32_100 = arith.constant 32 : i32
    %373 = tpu.dynamic_rotate %366 by %c32_i32_100 dim 1 : vector<2x128xf32>, i32 -> vector<2x128xf32>
    %374 = vector.extract_strided_slice %373 {offsets = [0, 0], sizes = [2, 32], strides = [1, 1]} : vector<2x128xf32> to vector<2x32xf32>
    %375 = arith.mulf %370, %327 : vector<2x32xf32>
    %376 = arith.mulf %368, %372 : vector<2x32xf32>
    %377 = arith.addf %375, %376 : vector<2x32xf32>
    %378 = math.tanh %377 : vector<2x32xf32>
    %379 = arith.mulf %374, %378 : vector<2x32xf32>
    %380 = vector.extract_strided_slice %352 {offsets = [0, 0], sizes = [2, 128], strides = [1, 1]} : vector<2x136xf32> to vector<2x128xf32>
    %381 = vector.broadcast %5 : vector<1x128xf32> to vector<2x128xf32>
    %382 = arith.addf %380, %381 : vector<2x128xf32>
    %383 = arith.negf %382 : vector<2x128xf32>
    %384 = math.exp %383 : vector<2x128xf32>
    %cst_101 = arith.constant 1.000000e+00 : f32
    %385 = vector.broadcast %cst_101 : f32 to vector<2x128xf32>
    %386 = arith.addf %385, %384 : vector<2x128xf32>
    %387 = arith.divf %385, %386 : vector<2x128xf32>
    %388 = math.tanh %382 : vector<2x128xf32>
    %389 = vector.extract_strided_slice %387 {offsets = [0, 0], sizes = [2, 32], strides = [1, 1]} : vector<2x128xf32> to vector<2x32xf32>
    %c96_i32_102 = arith.constant 96 : i32
    %390 = tpu.dynamic_rotate %387 by %c96_i32_102 dim 1 : vector<2x128xf32>, i32 -> vector<2x128xf32>
    %391 = vector.extract_strided_slice %390 {offsets = [0, 0], sizes = [2, 32], strides = [1, 1]} : vector<2x128xf32> to vector<2x32xf32>
    %c64_i32_103 = arith.constant 64 : i32
    %392 = tpu.dynamic_rotate %388 by %c64_i32_103 dim 1 : vector<2x128xf32>, i32 -> vector<2x128xf32>
    %393 = vector.extract_strided_slice %392 {offsets = [0, 0], sizes = [2, 32], strides = [1, 1]} : vector<2x128xf32> to vector<2x32xf32>
    %c32_i32_104 = arith.constant 32 : i32
    %394 = tpu.dynamic_rotate %387 by %c32_i32_104 dim 1 : vector<2x128xf32>, i32 -> vector<2x128xf32>
    %395 = vector.extract_strided_slice %394 {offsets = [0, 0], sizes = [2, 32], strides = [1, 1]} : vector<2x128xf32> to vector<2x32xf32>
    %396 = arith.mulf %391, %348 : vector<2x32xf32>
    %397 = arith.mulf %389, %393 : vector<2x32xf32>
    %398 = arith.addf %396, %397 : vector<2x32xf32>
    %399 = math.tanh %398 : vector<2x32xf32>
    %400 = arith.mulf %395, %399 : vector<2x32xf32>
    %401 = arith.truncf %400 : vector<2x32xf32> to vector<2x32xbf16>
    %cst_105 = arith.constant dense<0.000000e+00> : vector<2x136xf32>
    %402 = tpu.matmul %401, %1, %cst_105 {dimension_numbers = #tpu.dot_dimension_numbers<[1], [0], [0], [1], [0, 0, 1, 1], [], []>} : vector<2x32xbf16>, vector<32x136xbf16>, vector<2x136xf32> -> vector<2x136xf32>
    %403 = vector.extract_strided_slice %402 {offsets = [0, 128], sizes = [2, 8], strides = [1, 1]} : vector<2x136xf32> to vector<2x8xf32>
    %404 = vector.broadcast %9 : vector<1x8xf32> to vector<2x8xf32>
    %405 = arith.addf %403, %404 : vector<2x8xf32>
    %c0_106 = arith.constant 0 : index
    %c24 = arith.constant 24 : index
    %406 = vector.load %arg2[%c0_106, %c24] : memref<2x128xf32, #tpu.memory_space<vmem>>, vector<2x8xf32>
    tpu.vector_store %arg2[%c0_106, %c24], %405 {strides = array<i32>} : memref<2x128xf32, #tpu.memory_space<vmem>>, vector<2x8xf32>,
    %407 = tpu.concatenate %405, %379 in 1 : vector<2x8xf32>, vector<2x32xf32> -> vector<2x40xf32>
    %408 = arith.truncf %407 : vector<2x40xf32> to vector<2x40xbf16>
    %cst_107 = arith.constant dense<0.000000e+00> : vector<2x128xf32>
    %409 = tpu.matmul %408, %3, %cst_107 {dimension_numbers = #tpu.dot_dimension_numbers<[1], [0], [0], [1], [0, 0, 1, 1], [], []>} : vector<2x40xbf16>, vector<40x128xbf16>, vector<2x128xf32> -> vector<2x128xf32>
    %410 = vector.broadcast %6 : vector<1x128xf32> to vector<2x128xf32>
    %411 = arith.addf %409, %410 : vector<2x128xf32>
    %412 = arith.negf %411 : vector<2x128xf32>
    %413 = math.exp %412 : vector<2x128xf32>
    %cst_108 = arith.constant 1.000000e+00 : f32
    %414 = vector.broadcast %cst_108 : f32 to vector<2x128xf32>
    %415 = arith.addf %414, %413 : vector<2x128xf32>
    %416 = arith.divf %414, %415 : vector<2x128xf32>
    %417 = math.tanh %411 : vector<2x128xf32>
    %418 = vector.extract_strided_slice %416 {offsets = [0, 0], sizes = [2, 32], strides = [1, 1]} : vector<2x128xf32> to vector<2x32xf32>
    %c96_i32_109 = arith.constant 96 : i32
    %419 = tpu.dynamic_rotate %416 by %c96_i32_109 dim 1 : vector<2x128xf32>, i32 -> vector<2x128xf32>
    %420 = vector.extract_strided_slice %419 {offsets = [0, 0], sizes = [2, 32], strides = [1, 1]} : vector<2x128xf32> to vector<2x32xf32>
    %c64_i32_110 = arith.constant 64 : i32
    %421 = tpu.dynamic_rotate %417 by %c64_i32_110 dim 1 : vector<2x128xf32>, i32 -> vector<2x128xf32>
    %422 = vector.extract_strided_slice %421 {offsets = [0, 0], sizes = [2, 32], strides = [1, 1]} : vector<2x128xf32> to vector<2x32xf32>
    %c32_i32_111 = arith.constant 32 : i32
    %423 = tpu.dynamic_rotate %416 by %c32_i32_111 dim 1 : vector<2x128xf32>, i32 -> vector<2x128xf32>
    %424 = vector.extract_strided_slice %423 {offsets = [0, 0], sizes = [2, 32], strides = [1, 1]} : vector<2x128xf32> to vector<2x32xf32>
    %425 = arith.mulf %420, %377 : vector<2x32xf32>
    %426 = arith.mulf %418, %422 : vector<2x32xf32>
    %427 = arith.addf %425, %426 : vector<2x32xf32>
    %428 = math.tanh %427 : vector<2x32xf32>
    %429 = arith.mulf %424, %428 : vector<2x32xf32>
    %430 = vector.extract_strided_slice %402 {offsets = [0, 0], sizes = [2, 128], strides = [1, 1]} : vector<2x136xf32> to vector<2x128xf32>
    %431 = vector.broadcast %5 : vector<1x128xf32> to vector<2x128xf32>
    %432 = arith.addf %430, %431 : vector<2x128xf32>
    %433 = arith.negf %432 : vector<2x128xf32>
    %434 = math.exp %433 : vector<2x128xf32>
    %cst_112 = arith.constant 1.000000e+00 : f32
    %435 = vector.broadcast %cst_112 : f32 to vector<2x128xf32>
    %436 = arith.addf %435, %434 : vector<2x128xf32>
    %437 = arith.divf %435, %436 : vector<2x128xf32>
    %438 = math.tanh %432 : vector<2x128xf32>
    %439 = vector.extract_strided_slice %437 {offsets = [0, 0], sizes = [2, 32], strides = [1, 1]} : vector<2x128xf32> to vector<2x32xf32>
    %c96_i32_113 = arith.constant 96 : i32
    %440 = tpu.dynamic_rotate %437 by %c96_i32_113 dim 1 : vector<2x128xf32>, i32 -> vector<2x128xf32>
    %441 = vector.extract_strided_slice %440 {offsets = [0, 0], sizes = [2, 32], strides = [1, 1]} : vector<2x128xf32> to vector<2x32xf32>
    %c64_i32_114 = arith.constant 64 : i32
    %442 = tpu.dynamic_rotate %438 by %c64_i32_114 dim 1 : vector<2x128xf32>, i32 -> vector<2x128xf32>
    %443 = vector.extract_strided_slice %442 {offsets = [0, 0], sizes = [2, 32], strides = [1, 1]} : vector<2x128xf32> to vector<2x32xf32>
    %c32_i32_115 = arith.constant 32 : i32
    %444 = tpu.dynamic_rotate %437 by %c32_i32_115 dim 1 : vector<2x128xf32>, i32 -> vector<2x128xf32>
    %445 = vector.extract_strided_slice %444 {offsets = [0, 0], sizes = [2, 32], strides = [1, 1]} : vector<2x128xf32> to vector<2x32xf32>
    %446 = arith.mulf %441, %398 : vector<2x32xf32>
    %447 = arith.mulf %439, %443 : vector<2x32xf32>
    %448 = arith.addf %446, %447 : vector<2x32xf32>
    %449 = math.tanh %448 : vector<2x32xf32>
    %450 = arith.mulf %445, %449 : vector<2x32xf32>
    %451 = arith.truncf %450 : vector<2x32xf32> to vector<2x32xbf16>
    %cst_116 = arith.constant dense<0.000000e+00> : vector<2x136xf32>
    %452 = tpu.matmul %451, %1, %cst_116 {dimension_numbers = #tpu.dot_dimension_numbers<[1], [0], [0], [1], [0, 0, 1, 1], [], []>} : vector<2x32xbf16>, vector<32x136xbf16>, vector<2x136xf32> -> vector<2x136xf32>
    %453 = vector.extract_strided_slice %452 {offsets = [0, 128], sizes = [2, 8], strides = [1, 1]} : vector<2x136xf32> to vector<2x8xf32>
    %454 = vector.broadcast %9 : vector<1x8xf32> to vector<2x8xf32>
    %455 = arith.addf %453, %454 : vector<2x8xf32>
    %c0_117 = arith.constant 0 : index
    %c32 = arith.constant 32 : index
    %456 = vector.load %arg2[%c0_117, %c32] : memref<2x128xf32, #tpu.memory_space<vmem>>, vector<2x8xf32>
    tpu.vector_store %arg2[%c0_117, %c32], %455 {strides = array<i32>} : memref<2x128xf32, #tpu.memory_space<vmem>>, vector<2x8xf32>,
    %457 = tpu.concatenate %455, %429 in 1 : vector<2x8xf32>, vector<2x32xf32> -> vector<2x40xf32>
    %458 = arith.truncf %457 : vector<2x40xf32> to vector<2x40xbf16>
    %cst_118 = arith.constant dense<0.000000e+00> : vector<2x128xf32>
    %459 = tpu.matmul %458, %3, %cst_118 {dimension_numbers = #tpu.dot_dimension_numbers<[1], [0], [0], [1], [0, 0, 1, 1], [], []>} : vector<2x40xbf16>, vector<40x128xbf16>, vector<2x128xf32> -> vector<2x128xf32>
    %460 = vector.broadcast %6 : vector<1x128xf32> to vector<2x128xf32>
    %461 = arith.addf %459, %460 : vector<2x128xf32>
    %462 = arith.negf %461 : vector<2x128xf32>
    %463 = math.exp %462 : vector<2x128xf32>
    %cst_119 = arith.constant 1.000000e+00 : f32
    %464 = vector.broadcast %cst_119 : f32 to vector<2x128xf32>
    %465 = arith.addf %464, %463 : vector<2x128xf32>
    %466 = arith.divf %464, %465 : vector<2x128xf32>
    %467 = math.tanh %461 : vector<2x128xf32>
    %468 = vector.extract_strided_slice %466 {offsets = [0, 0], sizes = [2, 32], strides = [1, 1]} : vector<2x128xf32> to vector<2x32xf32>
    %c96_i32_120 = arith.constant 96 : i32
    %469 = tpu.dynamic_rotate %466 by %c96_i32_120 dim 1 : vector<2x128xf32>, i32 -> vector<2x128xf32>
    %470 = vector.extract_strided_slice %469 {offsets = [0, 0], sizes = [2, 32], strides = [1, 1]} : vector<2x128xf32> to vector<2x32xf32>
    %c64_i32_121 = arith.constant 64 : i32
    %471 = tpu.dynamic_rotate %467 by %c64_i32_121 dim 1 : vector<2x128xf32>, i32 -> vector<2x128xf32>
    %472 = vector.extract_strided_slice %471 {offsets = [0, 0], sizes = [2, 32], strides = [1, 1]} : vector<2x128xf32> to vector<2x32xf32>
    %c32_i32_122 = arith.constant 32 : i32
    %473 = tpu.dynamic_rotate %466 by %c32_i32_122 dim 1 : vector<2x128xf32>, i32 -> vector<2x128xf32>
    %474 = vector.extract_strided_slice %473 {offsets = [0, 0], sizes = [2, 32], strides = [1, 1]} : vector<2x128xf32> to vector<2x32xf32>
    %475 = arith.mulf %470, %427 : vector<2x32xf32>
    %476 = arith.mulf %468, %472 : vector<2x32xf32>
    %477 = arith.addf %475, %476 : vector<2x32xf32>
    %478 = math.tanh %477 : vector<2x32xf32>
    %479 = arith.mulf %474, %478 : vector<2x32xf32>
    %480 = vector.extract_strided_slice %452 {offsets = [0, 0], sizes = [2, 128], strides = [1, 1]} : vector<2x136xf32> to vector<2x128xf32>
    %481 = vector.broadcast %5 : vector<1x128xf32> to vector<2x128xf32>
    %482 = arith.addf %480, %481 : vector<2x128xf32>
    %483 = arith.negf %482 : vector<2x128xf32>
    %484 = math.exp %483 : vector<2x128xf32>
    %cst_123 = arith.constant 1.000000e+00 : f32
    %485 = vector.broadcast %cst_123 : f32 to vector<2x128xf32>
    %486 = arith.addf %485, %484 : vector<2x128xf32>
    %487 = arith.divf %485, %486 : vector<2x128xf32>
    %488 = math.tanh %482 : vector<2x128xf32>
    %489 = vector.extract_strided_slice %487 {offsets = [0, 0], sizes = [2, 32], strides = [1, 1]} : vector<2x128xf32> to vector<2x32xf32>
    %c96_i32_124 = arith.constant 96 : i32
    %490 = tpu.dynamic_rotate %487 by %c96_i32_124 dim 1 : vector<2x128xf32>, i32 -> vector<2x128xf32>
    %491 = vector.extract_strided_slice %490 {offsets = [0, 0], sizes = [2, 32], strides = [1, 1]} : vector<2x128xf32> to vector<2x32xf32>
    %c64_i32_125 = arith.constant 64 : i32
    %492 = tpu.dynamic_rotate %488 by %c64_i32_125 dim 1 : vector<2x128xf32>, i32 -> vector<2x128xf32>
    %493 = vector.extract_strided_slice %492 {offsets = [0, 0], sizes = [2, 32], strides = [1, 1]} : vector<2x128xf32> to vector<2x32xf32>
    %c32_i32_126 = arith.constant 32 : i32
    %494 = tpu.dynamic_rotate %487 by %c32_i32_126 dim 1 : vector<2x128xf32>, i32 -> vector<2x128xf32>
    %495 = vector.extract_strided_slice %494 {offsets = [0, 0], sizes = [2, 32], strides = [1, 1]} : vector<2x128xf32> to vector<2x32xf32>
    %496 = arith.mulf %491, %448 : vector<2x32xf32>
    %497 = arith.mulf %489, %493 : vector<2x32xf32>
    %498 = arith.addf %496, %497 : vector<2x32xf32>
    %499 = math.tanh %498 : vector<2x32xf32>
    %500 = arith.mulf %495, %499 : vector<2x32xf32>
    %501 = arith.truncf %500 : vector<2x32xf32> to vector<2x32xbf16>
    %cst_127 = arith.constant dense<0.000000e+00> : vector<2x136xf32>
    %502 = tpu.matmul %501, %1, %cst_127 {dimension_numbers = #tpu.dot_dimension_numbers<[1], [0], [0], [1], [0, 0, 1, 1], [], []>} : vector<2x32xbf16>, vector<32x136xbf16>, vector<2x136xf32> -> vector<2x136xf32>
    %503 = vector.extract_strided_slice %502 {offsets = [0, 128], sizes = [2, 8], strides = [1, 1]} : vector<2x136xf32> to vector<2x8xf32>
    %504 = vector.broadcast %9 : vector<1x8xf32> to vector<2x8xf32>
    %505 = arith.addf %503, %504 : vector<2x8xf32>
    %c0_128 = arith.constant 0 : index
    %c40_129 = arith.constant 40 : index
    %506 = vector.load %arg2[%c0_128, %c40_129] : memref<2x128xf32, #tpu.memory_space<vmem>>, vector<2x8xf32>
    tpu.vector_store %arg2[%c0_128, %c40_129], %505 {strides = array<i32>} : memref<2x128xf32, #tpu.memory_space<vmem>>, vector<2x8xf32>,
    %507 = tpu.concatenate %505, %479 in 1 : vector<2x8xf32>, vector<2x32xf32> -> vector<2x40xf32>
    %508 = arith.truncf %507 : vector<2x40xf32> to vector<2x40xbf16>
    %cst_130 = arith.constant dense<0.000000e+00> : vector<2x128xf32>
    %509 = tpu.matmul %508, %3, %cst_130 {dimension_numbers = #tpu.dot_dimension_numbers<[1], [0], [0], [1], [0, 0, 1, 1], [], []>} : vector<2x40xbf16>, vector<40x128xbf16>, vector<2x128xf32> -> vector<2x128xf32>
    %510 = vector.broadcast %6 : vector<1x128xf32> to vector<2x128xf32>
    %511 = arith.addf %509, %510 : vector<2x128xf32>
    %512 = arith.negf %511 : vector<2x128xf32>
    %513 = math.exp %512 : vector<2x128xf32>
    %cst_131 = arith.constant 1.000000e+00 : f32
    %514 = vector.broadcast %cst_131 : f32 to vector<2x128xf32>
    %515 = arith.addf %514, %513 : vector<2x128xf32>
    %516 = arith.divf %514, %515 : vector<2x128xf32>
    %517 = math.tanh %511 : vector<2x128xf32>
    %518 = vector.extract_strided_slice %516 {offsets = [0, 0], sizes = [2, 32], strides = [1, 1]} : vector<2x128xf32> to vector<2x32xf32>
    %c96_i32_132 = arith.constant 96 : i32
    %519 = tpu.dynamic_rotate %516 by %c96_i32_132 dim 1 : vector<2x128xf32>, i32 -> vector<2x128xf32>
    %520 = vector.extract_strided_slice %519 {offsets = [0, 0], sizes = [2, 32], strides = [1, 1]} : vector<2x128xf32> to vector<2x32xf32>
    %c64_i32_133 = arith.constant 64 : i32
    %521 = tpu.dynamic_rotate %517 by %c64_i32_133 dim 1 : vector<2x128xf32>, i32 -> vector<2x128xf32>
    %522 = vector.extract_strided_slice %521 {offsets = [0, 0], sizes = [2, 32], strides = [1, 1]} : vector<2x128xf32> to vector<2x32xf32>
    %c32_i32_134 = arith.constant 32 : i32
    %523 = tpu.dynamic_rotate %516 by %c32_i32_134 dim 1 : vector<2x128xf32>, i32 -> vector<2x128xf32>
    %524 = vector.extract_strided_slice %523 {offsets = [0, 0], sizes = [2, 32], strides = [1, 1]} : vector<2x128xf32> to vector<2x32xf32>
    %525 = arith.mulf %520, %477 : vector<2x32xf32>
    %526 = arith.mulf %518, %522 : vector<2x32xf32>
    %527 = arith.addf %525, %526 : vector<2x32xf32>
    %528 = math.tanh %527 : vector<2x32xf32>
    %529 = arith.mulf %524, %528 : vector<2x32xf32>
    %530 = vector.extract_strided_slice %502 {offsets = [0, 0], sizes = [2, 128], strides = [1, 1]} : vector<2x136xf32> to vector<2x128xf32>
    %531 = vector.broadcast %5 : vector<1x128xf32> to vector<2x128xf32>
    %532 = arith.addf %530, %531 : vector<2x128xf32>
    %533 = arith.negf %532 : vector<2x128xf32>
    %534 = math.exp %533 : vector<2x128xf32>
    %cst_135 = arith.constant 1.000000e+00 : f32
    %535 = vector.broadcast %cst_135 : f32 to vector<2x128xf32>
    %536 = arith.addf %535, %534 : vector<2x128xf32>
    %537 = arith.divf %535, %536 : vector<2x128xf32>
    %538 = math.tanh %532 : vector<2x128xf32>
    %539 = vector.extract_strided_slice %537 {offsets = [0, 0], sizes = [2, 32], strides = [1, 1]} : vector<2x128xf32> to vector<2x32xf32>
    %c96_i32_136 = arith.constant 96 : i32
    %540 = tpu.dynamic_rotate %537 by %c96_i32_136 dim 1 : vector<2x128xf32>, i32 -> vector<2x128xf32>
    %541 = vector.extract_strided_slice %540 {offsets = [0, 0], sizes = [2, 32], strides = [1, 1]} : vector<2x128xf32> to vector<2x32xf32>
    %c64_i32_137 = arith.constant 64 : i32
    %542 = tpu.dynamic_rotate %538 by %c64_i32_137 dim 1 : vector<2x128xf32>, i32 -> vector<2x128xf32>
    %543 = vector.extract_strided_slice %542 {offsets = [0, 0], sizes = [2, 32], strides = [1, 1]} : vector<2x128xf32> to vector<2x32xf32>
    %c32_i32_138 = arith.constant 32 : i32
    %544 = tpu.dynamic_rotate %537 by %c32_i32_138 dim 1 : vector<2x128xf32>, i32 -> vector<2x128xf32>
    %545 = vector.extract_strided_slice %544 {offsets = [0, 0], sizes = [2, 32], strides = [1, 1]} : vector<2x128xf32> to vector<2x32xf32>
    %546 = arith.mulf %541, %498 : vector<2x32xf32>
    %547 = arith.mulf %539, %543 : vector<2x32xf32>
    %548 = arith.addf %546, %547 : vector<2x32xf32>
    %549 = math.tanh %548 : vector<2x32xf32>
    %550 = arith.mulf %545, %549 : vector<2x32xf32>
    %551 = arith.truncf %550 : vector<2x32xf32> to vector<2x32xbf16>
    %cst_139 = arith.constant dense<0.000000e+00> : vector<2x136xf32>
    %552 = tpu.matmul %551, %1, %cst_139 {dimension_numbers = #tpu.dot_dimension_numbers<[1], [0], [0], [1], [0, 0, 1, 1], [], []>} : vector<2x32xbf16>, vector<32x136xbf16>, vector<2x136xf32> -> vector<2x136xf32>
    %553 = vector.extract_strided_slice %552 {offsets = [0, 128], sizes = [2, 8], strides = [1, 1]} : vector<2x136xf32> to vector<2x8xf32>
    %554 = vector.broadcast %9 : vector<1x8xf32> to vector<2x8xf32>
    %555 = arith.addf %553, %554 : vector<2x8xf32>
    %c0_140 = arith.constant 0 : index
    %c48 = arith.constant 48 : index
    %556 = vector.load %arg2[%c0_140, %c48] : memref<2x128xf32, #tpu.memory_space<vmem>>, vector<2x8xf32>
    tpu.vector_store %arg2[%c0_140, %c48], %555 {strides = array<i32>} : memref<2x128xf32, #tpu.memory_space<vmem>>, vector<2x8xf32>,
    %557 = tpu.concatenate %555, %529 in 1 : vector<2x8xf32>, vector<2x32xf32> -> vector<2x40xf32>
    %558 = arith.truncf %557 : vector<2x40xf32> to vector<2x40xbf16>
    %cst_141 = arith.constant dense<0.000000e+00> : vector<2x128xf32>
    %559 = tpu.matmul %558, %3, %cst_141 {dimension_numbers = #tpu.dot_dimension_numbers<[1], [0], [0], [1], [0, 0, 1, 1], [], []>} : vector<2x40xbf16>, vector<40x128xbf16>, vector<2x128xf32> -> vector<2x128xf32>
    %560 = vector.broadcast %6 : vector<1x128xf32> to vector<2x128xf32>
    %561 = arith.addf %559, %560 : vector<2x128xf32>
    %562 = arith.negf %561 : vector<2x128xf32>
    %563 = math.exp %562 : vector<2x128xf32>
    %cst_142 = arith.constant 1.000000e+00 : f32
    %564 = vector.broadcast %cst_142 : f32 to vector<2x128xf32>
    %565 = arith.addf %564, %563 : vector<2x128xf32>
    %566 = arith.divf %564, %565 : vector<2x128xf32>
    %567 = math.tanh %561 : vector<2x128xf32>
    %568 = vector.extract_strided_slice %566 {offsets = [0, 0], sizes = [2, 32], strides = [1, 1]} : vector<2x128xf32> to vector<2x32xf32>
    %c96_i32_143 = arith.constant 96 : i32
    %569 = tpu.dynamic_rotate %566 by %c96_i32_143 dim 1 : vector<2x128xf32>, i32 -> vector<2x128xf32>
    %570 = vector.extract_strided_slice %569 {offsets = [0, 0], sizes = [2, 32], strides = [1, 1]} : vector<2x128xf32> to vector<2x32xf32>
    %c64_i32_144 = arith.constant 64 : i32
    %571 = tpu.dynamic_rotate %567 by %c64_i32_144 dim 1 : vector<2x128xf32>, i32 -> vector<2x128xf32>
    %572 = vector.extract_strided_slice %571 {offsets = [0, 0], sizes = [2, 32], strides = [1, 1]} : vector<2x128xf32> to vector<2x32xf32>
    %c32_i32_145 = arith.constant 32 : i32
    %573 = tpu.dynamic_rotate %566 by %c32_i32_145 dim 1 : vector<2x128xf32>, i32 -> vector<2x128xf32>
    %574 = vector.extract_strided_slice %573 {offsets = [0, 0], sizes = [2, 32], strides = [1, 1]} : vector<2x128xf32> to vector<2x32xf32>
    %575 = arith.mulf %570, %527 : vector<2x32xf32>
    %576 = arith.mulf %568, %572 : vector<2x32xf32>
    %577 = arith.addf %575, %576 : vector<2x32xf32>
    %578 = math.tanh %577 : vector<2x32xf32>
    %579 = arith.mulf %574, %578 : vector<2x32xf32>
    %580 = vector.extract_strided_slice %552 {offsets = [0, 0], sizes = [2, 128], strides = [1, 1]} : vector<2x136xf32> to vector<2x128xf32>
    %581 = vector.broadcast %5 : vector<1x128xf32> to vector<2x128xf32>
    %582 = arith.addf %580, %581 : vector<2x128xf32>
    %583 = arith.negf %582 : vector<2x128xf32>
    %584 = math.exp %583 : vector<2x128xf32>
    %cst_146 = arith.constant 1.000000e+00 : f32
    %585 = vector.broadcast %cst_146 : f32 to vector<2x128xf32>
    %586 = arith.addf %585, %584 : vector<2x128xf32>
    %587 = arith.divf %585, %586 : vector<2x128xf32>
    %588 = math.tanh %582 : vector<2x128xf32>
    %589 = vector.extract_strided_slice %587 {offsets = [0, 0], sizes = [2, 32], strides = [1, 1]} : vector<2x128xf32> to vector<2x32xf32>
    %c96_i32_147 = arith.constant 96 : i32
    %590 = tpu.dynamic_rotate %587 by %c96_i32_147 dim 1 : vector<2x128xf32>, i32 -> vector<2x128xf32>
    %591 = vector.extract_strided_slice %590 {offsets = [0, 0], sizes = [2, 32], strides = [1, 1]} : vector<2x128xf32> to vector<2x32xf32>
    %c64_i32_148 = arith.constant 64 : i32
    %592 = tpu.dynamic_rotate %588 by %c64_i32_148 dim 1 : vector<2x128xf32>, i32 -> vector<2x128xf32>
    %593 = vector.extract_strided_slice %592 {offsets = [0, 0], sizes = [2, 32], strides = [1, 1]} : vector<2x128xf32> to vector<2x32xf32>
    %c32_i32_149 = arith.constant 32 : i32
    %594 = tpu.dynamic_rotate %587 by %c32_i32_149 dim 1 : vector<2x128xf32>, i32 -> vector<2x128xf32>
    %595 = vector.extract_strided_slice %594 {offsets = [0, 0], sizes = [2, 32], strides = [1, 1]} : vector<2x128xf32> to vector<2x32xf32>
    %596 = arith.mulf %591, %548 : vector<2x32xf32>
    %597 = arith.mulf %589, %593 : vector<2x32xf32>
    %598 = arith.addf %596, %597 : vector<2x32xf32>
    %599 = math.tanh %598 : vector<2x32xf32>
    %600 = arith.mulf %595, %599 : vector<2x32xf32>
    %601 = arith.truncf %600 : vector<2x32xf32> to vector<2x32xbf16>
    %cst_150 = arith.constant dense<0.000000e+00> : vector<2x8xf32>
    %602 = tpu.matmul %601, %2, %cst_150 {dimension_numbers = #tpu.dot_dimension_numbers<[1], [0], [0], [1], [0, 0, 1, 1], [], []>} : vector<2x32xbf16>, vector<32x8xbf16>, vector<2x8xf32> -> vector<2x8xf32>
    %603 = vector.broadcast %9 : vector<1x8xf32> to vector<2x8xf32>
    %604 = arith.addf %602, %603 : vector<2x8xf32>
    %c0_151 = arith.constant 0 : index
    %c56_152 = arith.constant 56 : index
    %605 = vector.load %arg2[%c0_151, %c56_152] : memref<2x128xf32, #tpu.memory_space<vmem>>, vector<2x8xf32>
    tpu.vector_store %arg2[%c0_151, %c56_152], %604 {strides = array<i32>} : memref<2x128xf32, #tpu.memory_space<vmem>>, vector<2x8xf32>,
    %606 = tpu.concatenate %604, %579 in 1 : vector<2x8xf32>, vector<2x32xf32> -> vector<2x40xf32>
    %607 = arith.truncf %606 : vector<2x40xf32> to vector<2x40xbf16>
    %cst_153 = arith.constant dense<0.000000e+00> : vector<2x128xf32>
    %608 = tpu.matmul %607, %3, %cst_153 {dimension_numbers = #tpu.dot_dimension_numbers<[1], [0], [0], [1], [0, 0, 1, 1], [], []>} : vector<2x40xbf16>, vector<40x128xbf16>, vector<2x128xf32> -> vector<2x128xf32>
    %609 = vector.broadcast %6 : vector<1x128xf32> to vector<2x128xf32>
    %610 = arith.addf %608, %609 : vector<2x128xf32>
    %611 = arith.negf %610 : vector<2x128xf32>
    %612 = math.exp %611 : vector<2x128xf32>
    %cst_154 = arith.constant 1.000000e+00 : f32
    %613 = vector.broadcast %cst_154 : f32 to vector<2x128xf32>
    %614 = arith.addf %613, %612 : vector<2x128xf32>
    %615 = arith.divf %613, %614 : vector<2x128xf32>
    %616 = math.tanh %610 : vector<2x128xf32>
    %617 = vector.extract_strided_slice %615 {offsets = [0, 0], sizes = [2, 32], strides = [1, 1]} : vector<2x128xf32> to vector<2x32xf32>
    %c96_i32_155 = arith.constant 96 : i32
    %618 = tpu.dynamic_rotate %615 by %c96_i32_155 dim 1 : vector<2x128xf32>, i32 -> vector<2x128xf32>
    %619 = vector.extract_strided_slice %618 {offsets = [0, 0], sizes = [2, 32], strides = [1, 1]} : vector<2x128xf32> to vector<2x32xf32>
    %c64_i32_156 = arith.constant 64 : i32
    %620 = tpu.dynamic_rotate %616 by %c64_i32_156 dim 1 : vector<2x128xf32>, i32 -> vector<2x128xf32>
    %621 = vector.extract_strided_slice %620 {offsets = [0, 0], sizes = [2, 32], strides = [1, 1]} : vector<2x128xf32> to vector<2x32xf32>
    %c32_i32_157 = arith.constant 32 : i32
    %622 = tpu.dynamic_rotate %615 by %c32_i32_157 dim 1 : vector<2x128xf32>, i32 -> vector<2x128xf32>
    %623 = vector.extract_strided_slice %622 {offsets = [0, 0], sizes = [2, 32], strides = [1, 1]} : vector<2x128xf32> to vector<2x32xf32>
    %624 = arith.mulf %619, %577 : vector<2x32xf32>
    %625 = arith.mulf %617, %621 : vector<2x32xf32>
    %626 = arith.addf %624, %625 : vector<2x32xf32>
    %627 = math.tanh %626 : vector<2x32xf32>
    %628 = arith.mulf %623, %627 : vector<2x32xf32>
    %629 = vector.broadcast %11 : vector<1x32xf32> to vector<2x32xf32>
    %630 = arith.mulf %628, %629 : vector<2x32xf32>
    %cst_158 = arith.constant dense<0.000000e+00> : vector<2xf32>
    %631 = vector.multi_reduction <add>, %630, %cst_158 [1] : vector<2x32xf32> to vector<2xf32>
    %632 = vector.shape_cast %631 : vector<2xf32> to vector<2x1xf32>
    %633 = vector.broadcast %10 : vector<1x1xf32> to vector<2x1xf32>
    %634 = arith.addf %632, %633 : vector<2x1xf32>
    %635 = arith.negf %634 : vector<2x1xf32>
    %636 = math.exp %635 : vector<2x1xf32>
    %cst_159 = arith.constant 1.000000e+00 : f32
    %637 = vector.broadcast %cst_159 : f32 to vector<2x1xf32>
    %638 = arith.addf %637, %636 : vector<2x1xf32>
    %639 = arith.divf %637, %638 : vector<2x1xf32>
    %c0_160 = arith.constant 0 : index
    %c64 = arith.constant 64 : index
    %640 = vector.load %arg2[%c0_160, %c64] : memref<2x128xf32, #tpu.memory_space<vmem>>, vector<2x16xf32>
    tpu.vector_store %arg2[%c0_160, %c64], %221 {strides = array<i32>} : memref<2x128xf32, #tpu.memory_space<vmem>>, vector<2x16xf32>,
    %c0_161 = arith.constant 0 : index
    %c80 = arith.constant 80 : index
    %641 = vector.load %arg2[%c0_161, %c80] : memref<2x128xf32, #tpu.memory_space<vmem>>, vector<2x32xf32>
    tpu.vector_store %arg2[%c0_161, %c80], %214 {strides = array<i32>} : memref<2x128xf32, #tpu.memory_space<vmem>>, vector<2x32xf32>,
    %c0_162 = arith.constant 0 : index
    %c112 = arith.constant 112 : index
    %642 = vector.load %arg2[%c0_162, %c112] : memref<2x128xf32, #tpu.memory_space<vmem>>, vector<2x1xf32>
    tpu.vector_store %arg2[%c0_162, %c112], %639 {strides = array<i32>} : memref<2x128xf32, #tpu.memory_space<vmem>>, vector<2x1xf32>,
    return
  }
}

</mosaic_0001>

<llo_original>
// kernel: aad_forward.1
$region0: #{aad_forward.1}
  #allocation0 [shape = 'u32[]', space=smem, size = 0x4, offset = 0x4, fixed_abs, tag = 'smem constant byte address 0x4 - core index']
  #allocation1 [shape = 'u32[72,128]{1,0:T(1,128)}', space=vmem, size = 0x9000, scoped, tag = 'internal scratch']
  %s0 = inlined_call_operand.vmem [shape: bf16[112,136], index: 0, kind: input, shape index: {}]
  %s1 = inlined_call_operand.vmem [shape: f32[60,128], index: 1, kind: input, shape index: {}]
  %s2 = inlined_call_operand.vmem [shape: f32[2,128], index: 2, kind: output, shape index: {}]
  %s3 = sld [smem:[#allocation0]]
  $region18: #{aad_forward.1} parent=0
    _
  %s5 = ssub.s32 1, %s3
  %s6 = scalar_select 0, %s5, %s3
  // Predicated region
  $region2: #{aad_forward.1} parent=0 // pred_check
    _
  $region3: #{aad_forward.1} parent=0 // pred_check_branch
    %8 = sbr.rel (0) target = $region5
  $region4: #{aad_forward.1} parent=0 // pred_region
    _
  $region5: #{aad_forward.1} parent=0 // pred_fallthru
    _
  // Predicated region
  $region6: #{aad_forward.1} parent=0 // pred_check
    _
  $region7: #{aad_forward.1} parent=0 // pred_check_branch
    %10 = sbr.rel (0) target = $region9
  $region8: #{aad_forward.1} parent=0 // pred_region
    _
  $region9: #{aad_forward.1} parent=0 // pred_fallthru
    _
  %v12 = vld [vmem:[%s0] sm:$0xf]
  %v13 = vld [vmem:[%s0 + $0x8] sm:$0xf]
  %v14 = vld [vmem:[%s0 + $0x10] sm:$0xf]
  %v15 = vld [vmem:[%s0 + $0x18] sm:$0xf]
  %v16 = vld [vmem:[%s0 + $0x20] sm:$0xf]
  %v17 = vld [vmem:[%s0 + $0x28] sm:$0xff]
  %v18 = vld [vmem:[%s0 + $0x30] sm:$0xff]
  %v19 = vld [vmem:[%s0 + $0x38] sm:$0xff]
  %v20 = vld [vmem:[%s0 + $0x40] sm:$0xff]
  %v21 = vld [vmem:[%s0 + $0x2c] sm:$0xf]
  %v22 = vld [vmem:[%s0 + $0x34] sm:$0xf]
  %v23 = vld [vmem:[%s0 + $0x3c] sm:$0xf]
  %v24 = vld [vmem:[%s0 + $0x44] sm:$0xf]
  %v25 = vld [vmem:[%s0 + $0x48] sm:$0xf]
  %v26 = vld [vmem:[%s0 + $0x50] sm:$0xf]
  %v27 = vld [vmem:[%s0 + $0x58] sm:$0xf]
  %v28 = vld [vmem:[%s0 + $0x60] sm:$0xf]
  %v29 = vld [vmem:[%s0 + $0x68] sm:$0xf]
  %v30 = vld [vmem:[%s1] sm:$0x1]
  %v31 = vld [vmem:[%s1 + $0x1] sm:$0x1]
  %v32 = vld [vmem:[%s1 + $0x2] sm:$0x1]
  %v33 = vld [vmem:[%s1 + $0x3] sm:$0x1]
  %v34 = vld [vmem:[%s1 + $0x4] sm:$0x1]
  %v35 = vld [vmem:[%s1 + $0x5] sm:$0x1]
  %v36 = vld [vmem:[%s1 + $0x6] sm:$0x1]
  %v37 = vld [vmem:[%s1 + $0x7] sm:$0x1]
  %v38 = vld [vmem:[%s1 + $0x8] sm:$0xff]
  %v39 = vld [vmem:[%s1 + $0x10] sm:$0xff]
  %v40 = vld [vmem:[%s1 + $0x18] sm:$0xff]
  %v41 = vld [vmem:[%s1 + $0x20] sm:$0xff]
  %v42 = vld [vmem:[%s1 + $0x28] sm:$0xff]
  %v43 = vld [vmem:[%s1 + $0x30] sm:$0xff]
  %v44 = vld [vmem:[%s1 + $0x38] sm:$0x3]
  %v45 = vld [vmem:[%s1 + $0x3a] sm:$0x3]
  %46 = vst [vmem:[%s2] sm:$0x3] 0.0
  %vm47 = vcmask 64512
  %v48 = vsel %vm47, %v45, 0.0
  %v49 = vpack.c.bf16 %v48, %v48
  %v50 = vperm.slane %v30, 0
  %v56 = vunpack.c.l.b16 %v12
  %v57 = vunpack.c.l.b16 %v13
  %v58 = vunpack.c.l.b16 %v14
  %v59 = vunpack.c.l.b16 %v15
  %v60 = vunpack.c.l.b16 %v16
  %v61 = vpack.c.b16 %v57, %v56
  %v62 = vpack.c.b16 %v59, %v58
  %v63 = vpack.c.b16 %v60, %v60
  %vm66 = vcmask 326656
  %v68 = vsel %vm66, %v49, 0
  %vm70 = vcmask 1043456
  %v72 = vsel %vm70, %v63, 0
  %74 = vmatpush.bf16.msra.mxu0 0
  %75 = vmatpush.bf16.msra.mxu0 0
  %76 = vmatpush.bf16.msra.mxu0 0
  %77 = vmatpush.bf16.msra.mxu0 0
  %78 = vmatpush.bf16.msra.mxu0 0
  %79 = vmatpush.bf16.msra.mxu0 %v72
  %80 = vmatpush.bf16.msra.mxu0 %v62
  %81 = vmatpush.bf16.msra.mxu0 %v61
  %82 = vmatmul.bf16.gmra.mxu0 %v68
  %v83 = vpop.f32.mrf.mxu0
  %v84 = vadd.f32 %v50, %v83
  %v85 = vpop.f32.mrf.mxu0
  %86 = vdwg.mxu0
  %v87 = vxor.u32 %v84, 2147483648
  %v88 = vmul.f32 %v87, 1.442695
  %v89 = vpow.pop %v88
  %v90 = vadd.f32 %v89, 1.0
  %v91 = vrcp.pop %v90
  %v92 = vmul.f32 %v90, %v91
  %v93 = vsub.f32 1.0, %v92
  %v94 = vmul.f32 %v91, %v93
  %v95 = vadd.f32 %v91, %v94
  %vm96 = vweird.f32 %v90
  %vm97 = vweird.f32 %v91
  %vm98 = vmor %vm96, %vm97
  %v99 = vsel %vm98, %v91, %v95
  %v100 = vand.u32 2147483647, %v90
  %vm101 = vcmp.eq.f32.partialorder %v100, 8.507059e+37
  %v102 = vand.u32 %v90, 2147483648
  %v103 = vor.u32 1.1754944e-38, %v102
  %v104 = vsel %vm101, %v103, %v99
  %v105 = vmul.f32 1.0, %v104
  %v106 = vtanh.pop %v84
  %107 = vrot.lane.b32.xlu0 %v105, 96
  %v108 = vpop.permute.xlu0 %107
  %109 = vrot.lane.b32.xlu0 %v106, 64
  %v110 = vpop.permute.xlu0 %109
  %111 = vrot.lane.b32.xlu0 %v105, 32
  %v112 = vpop.permute.xlu0 %111
  %v113 = vmul.f32 %v108, 0.0
  %v114 = vmul.f32 %v105, %v110
  %v115 = vadd.f32 %v113, %v114
  %v116 = vtanh.pop %v115
  %v117 = vmul.f32 %v112, %v116
  %119 = vrot.lane.b32.xlu0 %v45, 120
  %v120 = vpop.permute.xlu0 %119
  %123 = vrot.lane.b32.xlu0 %v117, 8
  %v124 = vpop.permute.xlu0 %123
  %v126 = vsel %vm47, %v120, %v124
  %v127 = vpack.c.bf16 %v126, %v126
  %v129 = vsel %vm66, %v127, 0
  %131 = vmatpush.bf16.msra.mxu0 0
  %132 = vmatpush.bf16.msra.mxu0 0
  %133 = vmatpush.bf16.msra.mxu0 0
  %134 = vmatpush.bf16.msra.mxu0 0
  %135 = vmatpush.bf16.msra.mxu0 0
  %136 = vmatpush.bf16.msra.mxu0 %v72
  %137 = vmatpush.bf16.msra.mxu0 %v62
  %138 = vmatpush.bf16.msra.mxu0 %v61
  %139 = vmatmul.bf16.gmra.mxu0 %v129
  %v140 = vpop.f32.mrf.mxu0
  %v141 = vadd.f32 %v50, %v140
  %v142 = vpop.f32.mrf.mxu0
  %143 = vdwg.mxu0
  %v144 = vxor.u32 %v141, 2147483648
  %v145 = vmul.f32 %v144, 1.442695
  %v146 = vpow.pop %v145
  %v147 = vadd.f32 %v146, 1.0
  %v148 = vrcp.pop %v147
  %v149 = vmul.f32 %v147, %v148
  %v150 = vsub.f32 1.0, %v149
  %v151 = vmul.f32 %v148, %v150
  %v152 = vadd.f32 %v148, %v151
  %vm153 = vweird.f32 %v147
  %vm154 = vweird.f32 %v148
  %vm155 = vmor %vm153, %vm154
  %v156 = vsel %vm155, %v148, %v152
  %v157 = vand.u32 2147483647, %v147
  %vm158 = vcmp.eq.f32.partialorder %v157, 8.507059e+37
  %v159 = vand.u32 %v147, 2147483648
  %v160 = vor.u32 1.1754944e-38, %v159
  %v161 = vsel %vm158, %v160, %v156
  %v162 = vmul.f32 1.0, %v161
  %v163 = vtanh.pop %v141
  %164 = vrot.lane.b32.xlu0 %v162, 96
  %v165 = vpop.permute.xlu0 %164
  %166 = vrot.lane.b32.xlu0 %v163, 64
  %v167 = vpop.permute.xlu0 %166
  %168 = vrot.lane.b32.xlu0 %v162, 32
  %v169 = vpop.permute.xlu0 %168
  %v170 = vmul.f32 %v165, %v115
  %v171 = vmul.f32 %v162, %v167
  %v172 = vadd.f32 %v170, %v171
  %v173 = vtanh.pop %v172
  %v174 = vmul.f32 %v169, %v173
  %175 = vrot.lane.b32.xlu0 %v45, 112
  %v176 = vpop.permute.xlu0 %175
  %179 = vrot.lane.b32.xlu0 %v174, 8
  %v180 = vpop.permute.xlu0 %179
  %v182 = vsel %vm47, %v176, %v180
  %v183 = vpack.c.bf16 %v182, %v182
  %v185 = vsel %vm66, %v183, 0
  %187 = vmatpush.bf16.msra.mxu0 0
  %188 = vmatpush.bf16.msra.mxu0 0
  %189 = vmatpush.bf16.msra.mxu0 0
  %190 = vmatpush.bf16.msra.mxu0 0
  %191 = vmatpush.bf16.msra.mxu0 0
  %192 = vmatpush.bf16.msra.mxu0 %v72
  %193 = vmatpush.bf16.msra.mxu0 %v62
  %194 = vmatpush.bf16.msra.mxu0 %v61
  %195 = vmatmul.bf16.gmra.mxu0 %v185
  %v196 = vpop.f32.mrf.mxu0
  %v197 = vadd.f32 %v50, %v196
  %v198 = vpop.f32.mrf.mxu0
  %199 = vdwg.mxu0
  %v200 = vxor.u32 %v197, 2147483648
  %v201 = vmul.f32 %v200, 1.442695
  %v202 = vpow.pop %v201
  %v203 = vadd.f32 %v202, 1.0
  %v204 = vrcp.pop %v203
  %v205 = vmul.f32 %v203, %v204
  %v206 = vsub.f32 1.0, %v205
  %v207 = vmul.f32 %v204, %v206
  %v208 = vadd.f32 %v204, %v207
  %vm209 = vweird.f32 %v203
  %vm210 = vweird.f32 %v204
  %vm211 = vmor %vm209, %vm210
  %v212 = vsel %vm211, %v204, %v208
  %v213 = vand.u32 2147483647, %v203
  %vm214 = vcmp.eq.f32.partialorder %v213, 8.507059e+37
  %v215 = vand.u32 %v203, 2147483648
  %v216 = vor.u32 1.1754944e-38, %v215
  %v217 = vsel %vm214, %v216, %v212
  %v218 = vmul.f32 1.0, %v217
  %v219 = vtanh.pop %v197
  %220 = vrot.lane.b32.xlu0 %v218, 96
  %v221 = vpop.permute.xlu0 %220
  %222 = vrot.lane.b32.xlu0 %v219, 64
  %v223 = vpop.permute.xlu0 %222
  %224 = vrot.lane.b32.xlu0 %v218, 32
  %v225 = vpop.permute.xlu0 %224
  %v226 = vmul.f32 %v221, %v172
  %v227 = vmul.f32 %v218, %v223
  %v228 = vadd.f32 %v226, %v227
  %v229 = vtanh.pop %v228
  %v230 = vmul.f32 %v225, %v229
  %231 = vrot.lane.b32.xlu0 %v45, 104
  %v232 = vpop.permute.xlu0 %231
  %235 = vrot.lane.b32.xlu0 %v230, 8
  %v236 = vpop.permute.xlu0 %235
  %v238 = vsel %vm47, %v232, %v236
  %v239 = vpack.c.bf16 %v238, %v238
  %v241 = vsel %vm66, %v239, 0
  %243 = vmatpush.bf16.msra.mxu0 0
  %244 = vmatpush.bf16.msra.mxu0 0
  %245 = vmatpush.bf16.msra.mxu0 0
  %246 = vmatpush.bf16.msra.mxu0 0
  %247 = vmatpush.bf16.msra.mxu0 0
  %248 = vmatpush.bf16.msra.mxu0 %v72
  %249 = vmatpush.bf16.msra.mxu0 %v62
  %250 = vmatpush.bf16.msra.mxu0 %v61
  %251 = vmatmul.bf16.gmra.mxu0 %v241
  %v252 = vpop.f32.mrf.mxu0
  %v253 = vadd.f32 %v50, %v252
  %v254 = vpop.f32.mrf.mxu0
  %255 = vdwg.mxu0
  %v256 = vxor.u32 %v253, 2147483648
  %v257 = vmul.f32 %v256, 1.442695
  %v258 = vpow.pop %v257
  %v259 = vadd.f32 %v258, 1.0
  %v260 = vrcp.pop %v259
  %v261 = vmul.f32 %v259, %v260
  %v262 = vsub.f32 1.0, %v261
  %v263 = vmul.f32 %v260, %v262
  %v264 = vadd.f32 %v260, %v263
  %vm265 = vweird.f32 %v259
  %vm266 = vweird.f32 %v260
  %vm267 = vmor %vm265, %vm266
  %v268 = vsel %vm267, %v260, %v264
  %v269 = vand.u32 2147483647, %v259
  %vm270 = vcmp.eq.f32.partialorder %v269, 8.507059e+37
  %v271 = vand.u32 %v259, 2147483648
  %v272 = vor.u32 1.1754944e-38, %v271
  %v273 = vsel %vm270, %v272, %v268
  %v274 = vmul.f32 1.0, %v273
  %v275 = vtanh.pop %v253
  %276 = vrot.lane.b32.xlu0 %v274, 96
  %v277 = vpop.permute.xlu0 %276
  %278 = vrot.lane.b32.xlu0 %v275, 64
  %v279 = vpop.permute.xlu0 %278
  %280 = vrot.lane.b32.xlu0 %v274, 32
  %v281 = vpop.permute.xlu0 %280
  %v282 = vmul.f32 %v277, %v228
  %v283 = vmul.f32 %v274, %v279
  %v284 = vadd.f32 %v282, %v283
  %v285 = vtanh.pop %v284
  %v286 = vmul.f32 %v281, %v285
  %287 = vrot.lane.b32.xlu0 %v45, 96
  %v288 = vpop.permute.xlu0 %287
  %291 = vrot.lane.b32.xlu0 %v286, 8
  %v292 = vpop.permute.xlu0 %291
  %v294 = vsel %vm47, %v288, %v292
  %v295 = vpack.c.bf16 %v294, %v294
  %v297 = vsel %vm66, %v295, 0
  %299 = vmatpush.bf16.msra.mxu0 0
  %300 = vmatpush.bf16.msra.mxu0 0
  %301 = vmatpush.bf16.msra.mxu0 0
  %302 = vmatpush.bf16.msra.mxu0 0
  %303 = vmatpush.bf16.msra.mxu0 0
  %304 = vmatpush.bf16.msra.mxu0 %v72
  %305 = vmatpush.bf16.msra.mxu0 %v62
  %306 = vmatpush.bf16.msra.mxu0 %v61
  %307 = vmatmul.bf16.gmra.mxu0 %v297
  %v308 = vpop.f32.mrf.mxu0
  %v309 = vadd.f32 %v50, %v308
  %v310 = vpop.f32.mrf.mxu0
  %311 = vdwg.mxu0
  %v312 = vxor.u32 %v309, 2147483648
  %v313 = vmul.f32 %v312, 1.442695
  %v314 = vpow.pop %v313
  %v315 = vadd.f32 %v314, 1.0
  %v316 = vrcp.pop %v315
  %v317 = vmul.f32 %v315, %v316
  %v318 = vsub.f32 1.0, %v317
  %v319 = vmul.f32 %v316, %v318
  %v320 = vadd.f32 %v316, %v319
  %vm321 = vweird.f32 %v315
  %vm322 = vweird.f32 %v316
  %vm323 = vmor %vm321, %vm322
  %v324 = vsel %vm323, %v316, %v320
  %v325 = vand.u32 2147483647, %v315
  %vm326 = vcmp.eq.f32.partialorder %v325, 8.507059e+37
  %v327 = vand.u32 %v315, 2147483648
  %v328 = vor.u32 1.1754944e-38, %v327
  %v329 = vsel %vm326, %v328, %v324
  %v330 = vmul.f32 1.0, %v329
  %v331 = vtanh.pop %v309
  %332 = vrot.lane.b32.xlu0 %v330, 96
  %v333 = vpop.permute.xlu0 %332
  %334 = vrot.lane.b32.xlu0 %v331, 64
  %v335 = vpop.permute.xlu0 %334
  %336 = vrot.lane.b32.xlu0 %v330, 32
  %v337 = vpop.permute.xlu0 %336
  %v338 = vmul.f32 %v333, %v284
  %v339 = vmul.f32 %v330, %v335
  %v340 = vadd.f32 %v338, %v339
  %v341 = vtanh.pop %v340
  %v342 = vmul.f32 %v337, %v341
  %343 = vrot.lane.b32.xlu0 %v45, 88
  %v344 = vpop.permute.xlu0 %343
  %347 = vrot.lane.b32.xlu0 %v342, 8
  %v348 = vpop.permute.xlu0 %347
  %v350 = vsel %vm47, %v344, %v348
  %v351 = vpack.c.bf16 %v350, %v350
  %v353 = vsel %vm66, %v351, 0
  %355 = vmatpush.bf16.msra.mxu0 0
  %356 = vmatpush.bf16.msra.mxu0 0
  %357 = vmatpush.bf16.msra.mxu0 0
  %358 = vmatpush.bf16.msra.mxu0 0
  %359 = vmatpush.bf16.msra.mxu0 0
  %360 = vmatpush.bf16.msra.mxu0 %v72
  %361 = vmatpush.bf16.msra.mxu0 %v62
  %362 = vmatpush.bf16.msra.mxu0 %v61
  %363 = vmatmul.bf16.gmra.mxu0 %v353
  %v364 = vpop.f32.mrf.mxu0
  %v365 = vadd.f32 %v50, %v364
  %v366 = vpop.f32.mrf.mxu0
  %367 = vdwg.mxu0
  %v368 = vxor.u32 %v365, 2147483648
  %v369 = vmul.f32 %v368, 1.442695
  %v370 = vpow.pop %v369
  %v371 = vadd.f32 %v370, 1.0
  %v372 = vrcp.pop %v371
  %v373 = vmul.f32 %v371, %v372
  %v374 = vsub.f32 1.0, %v373
  %v375 = vmul.f32 %v372, %v374
  %v376 = vadd.f32 %v372, %v375
  %vm377 = vweird.f32 %v371
  %vm378 = vweird.f32 %v372
  %vm379 = vmor %vm377, %vm378
  %v380 = vsel %vm379, %v372, %v376
  %v381 = vand.u32 2147483647, %v371
  %vm382 = vcmp.eq.f32.partialorder %v381, 8.507059e+37
  %v383 = vand.u32 %v371, 2147483648
  %v384 = vor.u32 1.1754944e-38, %v383
  %v385 = vsel %vm382, %v384, %v380
  %v386 = vmul.f32 1.0, %v385
  %v387 = vtanh.pop %v365
  %388 = vrot.lane.b32.xlu0 %v386, 96
  %v389 = vpop.permute.xlu0 %388
  %390 = vrot.lane.b32.xlu0 %v387, 64
  %v391 = vpop.permute.xlu0 %390
  %392 = vrot.lane.b32.xlu0 %v386, 32
  %v393 = vpop.permute.xlu0 %392
  %v394 = vmul.f32 %v389, %v340
  %v395 = vmul.f32 %v386, %v391
  %v396 = vadd.f32 %v394, %v395
  %v397 = vtanh.pop %v396
  %v398 = vmul.f32 %v393, %v397
  %399 = vrot.lane.b32.xlu0 %v45, 80
  %v400 = vpop.permute.xlu0 %399
  %403 = vrot.lane.b32.xlu0 %v398, 8
  %v404 = vpop.permute.xlu0 %403
  %v406 = vsel %vm47, %v400, %v404
  %v407 = vpack.c.bf16 %v406, %v406
  %v409 = vsel %vm66, %v407, 0
  %411 = vmatpush.bf16.msra.mxu0 0
  %412 = vmatpush.bf16.msra.mxu0 0
  %413 = vmatpush.bf16.msra.mxu0 0
  %414 = vmatpush.bf16.msra.mxu0 0
  %415 = vmatpush.bf16.msra.mxu0 0
  %416 = vmatpush.bf16.msra.mxu0 %v72
  %417 = vmatpush.bf16.msra.mxu0 %v62
  %418 = vmatpush.bf16.msra.mxu0 %v61
  %419 = vmatmul.bf16.gmra.mxu0 %v409
  %v420 = vpop.f32.mrf.mxu0
  %v421 = vadd.f32 %v50, %v420
  %v422 = vpop.f32.mrf.mxu0
  %423 = vdwg.mxu0
  %v424 = vxor.u32 %v421, 2147483648
  %v425 = vmul.f32 %v424, 1.442695
  %v426 = vpow.pop %v425
  %v427 = vadd.f32 %v426, 1.0
  %v428 = vrcp.pop %v427
  %v429 = vmul.f32 %v427, %v428
  %v430 = vsub.f32 1.0, %v429
  %v431 = vmul.f32 %v428, %v430
  %v432 = vadd.f32 %v428, %v431
  %vm433 = vweird.f32 %v427
  %vm434 = vweird.f32 %v428
  %vm435 = vmor %vm433, %vm434
  %v436 = vsel %vm435, %v428, %v432
  %v437 = vand.u32 2147483647, %v427
  %vm438 = vcmp.eq.f32.partialorder %v437, 8.507059e+37
  %v439 = vand.u32 %v427, 2147483648
  %v440 = vor.u32 1.1754944e-38, %v439
  %v441 = vsel %vm438, %v440, %v436
  %v442 = vmul.f32 1.0, %v441
  %v443 = vtanh.pop %v421
  %444 = vrot.lane.b32.xlu0 %v442, 96
  %v445 = vpop.permute.xlu0 %444
  %446 = vrot.lane.b32.xlu0 %v443, 64
  %v447 = vpop.permute.xlu0 %446
  %448 = vrot.lane.b32.xlu0 %v442, 32
  %v449 = vpop.permute.xlu0 %448
  %v450 = vmul.f32 %v445, %v396
  %v451 = vmul.f32 %v442, %v447
  %v452 = vadd.f32 %v450, %v451
  %v453 = vtanh.pop %v452
  %v454 = vmul.f32 %v449, %v453
  %455 = vrot.lane.b32.xlu0 %v45, 72
  %v456 = vpop.permute.xlu0 %455
  %459 = vrot.lane.b32.xlu0 %v454, 8
  %v460 = vpop.permute.xlu0 %459
  %v462 = vsel %vm47, %v456, %v460
  %v463 = vpack.c.bf16 %v462, %v462
  %v465 = vsel %vm66, %v463, 0
  %467 = vmatpush.bf16.msra.mxu0 0
  %468 = vmatpush.bf16.msra.mxu0 0
  %469 = vmatpush.bf16.msra.mxu0 0
  %470 = vmatpush.bf16.msra.mxu0 0
  %471 = vmatpush.bf16.msra.mxu0 0
  %472 = vmatpush.bf16.msra.mxu0 %v72
  %473 = vmatpush.bf16.msra.mxu0 %v62
  %474 = vmatpush.bf16.msra.mxu0 %v61
  %475 = vmatmul.bf16.gmra.mxu0 %v465
  %v476 = vpop.f32.mrf.mxu0
  %v477 = vadd.f32 %v50, %v476
  %v478 = vpop.f32.mrf.mxu0
  %479 = vdwg.mxu0
  %v480 = vxor.u32 %v477, 2147483648
  %v481 = vmul.f32 %v480, 1.442695
  %v482 = vpow.pop %v481
  %v483 = vadd.f32 %v482, 1.0
  %v484 = vrcp.pop %v483
  %v485 = vmul.f32 %v483, %v484
  %v486 = vsub.f32 1.0, %v485
  %v487 = vmul.f32 %v484, %v486
  %v488 = vadd.f32 %v484, %v487
  %vm489 = vweird.f32 %v483
  %vm490 = vweird.f32 %v484
  %vm491 = vmor %vm489, %vm490
  %v492 = vsel %vm491, %v484, %v488
  %v493 = vand.u32 2147483647, %v483
  %vm494 = vcmp.eq.f32.partialorder %v493, 8.507059e+37
  %v495 = vand.u32 %v483, 2147483648
  %v496 = vor.u32 1.1754944e-38, %v495
  %v497 = vsel %vm494, %v496, %v492
  %v498 = vmul.f32 1.0, %v497
  %v499 = vtanh.pop %v477
  %500 = vrot.lane.b32.xlu0 %v498, 96
  %v501 = vpop.permute.xlu0 %500
  %502 = vrot.lane.b32.xlu0 %v499, 64
  %v503 = vpop.permute.xlu0 %502
  %504 = vrot.lane.b32.xlu0 %v498, 32
  %v505 = vpop.permute.xlu0 %504
  %v506 = vmul.f32 %v501, %v452
  %v507 = vmul.f32 %v498, %v503
  %v508 = vadd.f32 %v506, %v507
  %v509 = vtanh.pop %v508
  %v510 = vmul.f32 %v505, %v509
  %v511 = vperm.slane %v33, 0
  %vm512 = vcmask 261120
  %v514 = vsel %vm512, %v510, 0
  %516 = vmatpush.msra.mxu0 0.0
  %517 = vmatpush.msra.mxu0 0.0
  %518 = vmatpush.msra.mxu0 0.0
  %519 = vmatpush.msra.mxu0 0.0
  %520 = vmatpush.msra.mxu0 0.0
  %521 = vmatpush.msra.mxu0 0.0
  %522 = vmatpush.msra.mxu0 0.0
  %523 = vmatpush.msra.mxu0 0.0
  %524 = vmatpush.msra.mxu0 0.0
  %525 = vmatpush.msra.mxu0 0.0
  %526 = vmatpush.msra.mxu0 0.0
  %527 = vmatpush.msra.mxu0 0.0
  %528 = vmatpush.msra.mxu0 %v41
  %529 = vmatpush.msra.mxu0 %v40
  %530 = vmatpush.msra.mxu0 %v39
  %531 = vmatpush.msra.mxu0 %v38
  %532 = vmatmul.f32.gmra.mxu0 %v514
  %v533 = vpop.f32.mrf.mxu0
  %v534 = vadd.f32 %v511, %v533
  %535 = vdwg.mxu0
  %v536 = vmul.f32 %v534, 0.5
  %v537 = vmul.f32 %v536, 1.442695
  %v538 = vpow.pop %v537
  %540 = vrot.lane.b32.xlu0 %v44, 16
  %v541 = vpop.permute.xlu0 %540
  %v543 = vmul.f32 %v538, %v541
  %545 = vrot.lane.b32.xlu0 %v543, 112
  %v546 = vpop.permute.xlu0 %545
  %v548 = vadd.f32 %v534, %v546
  %v549 = vperm.slane %v34, 0
  %vm550 = vcmask 130048
  %v552 = vsel %vm550, %v548, 0
  %554 = vmatpush.msra.mxu0 0.0
  %555 = vmatpush.msra.mxu0 0.0
  %556 = vmatpush.msra.mxu0 0.0
  %557 = vmatpush.msra.mxu0 0.0
  %558 = vmatpush.msra.mxu0 0.0
  %559 = vmatpush.msra.mxu0 0.0
  %560 = vmatpush.msra.mxu0 0.0
  %561 = vmatpush.msra.mxu0 0.0
  %562 = vmatpush.msra.mxu0 0.0
  %563 = vmatpush.msra.mxu0 0.0
  %564 = vmatpush.msra.mxu0 0.0
  %565 = vmatpush.msra.mxu0 0.0
  %566 = vmatpush.msra.mxu0 0.0
  %567 = vmatpush.msra.mxu0 0.0
  %568 = vmatpush.msra.mxu0 %v43
  %569 = vmatpush.msra.mxu0 %v42
  %570 = vmatmul.f32.gmra.mxu0 %v552
  %v571 = vpop.f32.mrf.mxu0
  %v572 = vadd.f32 %v549, %v571
  %573 = vdwg.mxu0
  %v574 = vpack.c.bf16 %v572, %v572
  %v579 = vunpack.c.l.b16 %v17
  %v580 = vunpack.c.l.b16 %v18
  %v581 = vunpack.c.l.b16 %v19
  %v582 = vunpack.c.l.b16 %v20
  %v583 = vpack.c.b16 %v580, %v579
  %v584 = vpack.c.b16 %v582, %v581
  %v588 = vsel %vm512, %v574, 0
  %590 = vmatpush.bf16.msra.mxu0 0
  %591 = vmatpush.bf16.msra.mxu0 0
  %592 = vmatpush.bf16.msra.mxu0 0
  %593 = vmatpush.bf16.msra.mxu0 0
  %594 = vmatpush.bf16.msra.mxu0 0
  %595 = vmatpush.bf16.msra.mxu0 0
  %596 = vmatpush.bf16.msra.mxu0 %v584
  %597 = vmatpush.bf16.msra.mxu0 %v583
  %598 = vmatmul.bf16.gmra.mxu0 %v588
  %v599 = vpop.f32.mrf.mxu0
  %v600 = vadd.f32 0.0, %v599
  %v601 = vpop.f32.mrf.mxu0
  %602 = vdwg.mxu0
  %v603 = vperm.slane %v31, 0
  %v604 = vadd.f32 %v600, %v603
  %v605 = vxor.u32 %v604, 2147483648
  %v606 = vmul.f32 %v605, 1.442695
  %v607 = vpow.pop %v606
  %v608 = vadd.f32 %v607, 1.0
  %v609 = vrcp.pop %v608
  %v610 = vmul.f32 %v608, %v609
  %v611 = vsub.f32 1.0, %v610
  %v612 = vmul.f32 %v609, %v611
  %v613 = vadd.f32 %v609, %v612
  %vm614 = vweird.f32 %v608
  %vm615 = vweird.f32 %v609
  %vm616 = vmor %vm614, %vm615
  %v617 = vsel %vm616, %v609, %v613
  %v618 = vand.u32 2147483647, %v608
  %vm619 = vcmp.eq.f32.partialorder %v618, 8.507059e+37
  %v620 = vand.u32 %v608, 2147483648
  %v621 = vor.u32 1.1754944e-38, %v620
  %v622 = vsel %vm619, %v621, %v617
  %v623 = vmul.f32 1.0, %v622
  %v624 = vtanh.pop %v604
  %625 = vrot.lane.b32.xlu0 %v623, 96
  %v626 = vpop.permute.xlu0 %625
  %627 = vrot.lane.b32.xlu0 %v624, 64
  %v628 = vpop.permute.xlu0 %627
  %629 = vrot.lane.b32.xlu0 %v623, 32
  %v630 = vpop.permute.xlu0 %629
  %v631 = vmul.f32 %v626, 0.0
  %v632 = vmul.f32 %v623, %v628
  %v633 = vadd.f32 %v631, %v632
  %v634 = vtanh.pop %v633
  %v635 = vmul.f32 %v630, %v634
  %v636 = vpack.c.bf16 %v635, %v635
  %v637 = vunpack.c.h.b16 %v17
  %v638 = vunpack.c.h.b16 %v18
  %v639 = vunpack.c.h.b16 %v19
  %v640 = vunpack.c.h.b16 %v20
  %v641 = vpack.c.b16 %v638, %v637
  %v642 = vpack.c.b16 %v640, %v639
  %v646 = vsel %vm512, %v636, 0
  %648 = vmatpush.bf16.msra.mxu0 0
  %649 = vmatpush.bf16.msra.mxu0 0
  %650 = vmatpush.bf16.msra.mxu0 0
  %651 = vmatpush.bf16.msra.mxu0 0
  %652 = vmatpush.bf16.msra.mxu0 0
  %653 = vmatpush.bf16.msra.mxu0 0
  %654 = vmatpush.bf16.msra.mxu0 %v584
  %655 = vmatpush.bf16.msra.mxu0 %v583
  %656 = vmatmul.bf16.gmra.mxu0 %v646
  %v657 = vpop.f32.mrf.mxu0
  %v658 = vadd.f32 0.0, %v657
  %v659 = vpop.f32.mrf.mxu0
  %660 = vdwg.mxu0
  %661 = vmatpush.bf16.msra.mxu0 0
  %662 = vmatpush.bf16.msra.mxu0 0
  %663 = vmatpush.bf16.msra.mxu0 0
  %664 = vmatpush.bf16.msra.mxu0 0
  %665 = vmatpush.bf16.msra.mxu0 0
  %666 = vmatpush.bf16.msra.mxu0 0
  %667 = vmatpush.bf16.msra.mxu0 %v642
  %668 = vmatpush.bf16.msra.mxu0 %v641
  %669 = vmatmul.bf16.gmra.mxu0 %v646
  %v670 = vpop.f32.mrf.mxu0
  %v671 = vadd.f32 0.0, %v670
  %v672 = vpop.f32.mrf.mxu0
  %673 = vdwg.mxu0
  %v674 = vperm.slane %v35, 0
  %v675 = vadd.f32 %v671, %v674
  %vm676 = vcmask 58368
  %677 = vst.msk [vmem:[%s2] sm:$0x3] %vm676, %v675
  %v678 = vsel %vm47, %v675, 0.0
  %v679 = vpack.c.bf16 %v678, %v678
  %v680 = vperm.slane %v32, 0
  %v686 = vunpack.c.l.b16 %v25
  %v687 = vunpack.c.l.b16 %v26
  %v688 = vunpack.c.l.b16 %v27
  %v689 = vunpack.c.l.b16 %v28
  %v690 = vunpack.c.l.b16 %v29
  %v691 = vpack.c.b16 %v687, %v686
  %v692 = vpack.c.b16 %v689, %v688
  %v693 = vpack.c.b16 %v690, %v690
  %v697 = vsel %vm66, %v679, 0
  %v700 = vsel %vm70, %v693, 0
  %702 = vmatpush.bf16.msra.mxu0 0
  %703 = vmatpush.bf16.msra.mxu0 0
  %704 = vmatpush.bf16.msra.mxu0 0
  %705 = vmatpush.bf16.msra.mxu0 0
  %706 = vmatpush.bf16.msra.mxu0 0
  %707 = vmatpush.bf16.msra.mxu0 %v700
  %708 = vmatpush.bf16.msra.mxu0 %v692
  %709 = vmatpush.bf16.msra.mxu0 %v691
  %710 = vmatmul.bf16.gmra.mxu0 %v697
  %v711 = vpop.f32.mrf.mxu0
  %v712 = vadd.f32 %v680, %v711
  %v713 = vpop.f32.mrf.mxu0
  %714 = vdwg.mxu0
  %v715 = vxor.u32 %v712, 2147483648
  %v716 = vmul.f32 %v715, 1.442695
  %v717 = vpow.pop %v716
  %v718 = vadd.f32 %v717, 1.0
  %v719 = vrcp.pop %v718
  %v720 = vmul.f32 %v718, %v719
  %v721 = vsub.f32 1.0, %v720
  %v722 = vmul.f32 %v719, %v721
  %v723 = vadd.f32 %v719, %v722
  %vm724 = vweird.f32 %v718
  %vm725 = vweird.f32 %v719
  %vm726 = vmor %vm724, %vm725
  %v727 = vsel %vm726, %v719, %v723
  %v728 = vand.u32 2147483647, %v718
  %vm729 = vcmp.eq.f32.partialorder %v728, 8.507059e+37
  %v730 = vand.u32 %v718, 2147483648
  %v731 = vor.u32 1.1754944e-38, %v730
  %v732 = vsel %vm729, %v731, %v727
  %v733 = vmul.f32 1.0, %v732
  %v734 = vtanh.pop %v712
  %735 = vrot.lane.b32.xlu0 %v733, 96
  %v736 = vpop.permute.xlu0 %735
  %737 = vrot.lane.b32.xlu0 %v734, 64
  %v738 = vpop.permute.xlu0 %737
  %739 = vrot.lane.b32.xlu0 %v733, 32
  %v740 = vpop.permute.xlu0 %739
  %v741 = vmul.f32 %v736, 0.0
  %v742 = vmul.f32 %v733, %v738
  %v743 = vadd.f32 %v741, %v742
  %v744 = vtanh.pop %v743
  %v745 = vmul.f32 %v740, %v744
  %v746 = vadd.f32 %v658, %v603
  %v747 = vxor.u32 %v746, 2147483648
  %v748 = vmul.f32 %v747, 1.442695
  %v749 = vpow.pop %v748
  %v750 = vadd.f32 %v749, 1.0
  %v751 = vrcp.pop %v750
  %v752 = vmul.f32 %v750, %v751
  %v753 = vsub.f32 1.0, %v752
  %v754 = vmul.f32 %v751, %v753
  %v755 = vadd.f32 %v751, %v754
  %vm756 = vweird.f32 %v750
  %vm757 = vweird.f32 %v751
  %vm758 = vmor %vm756, %vm757
  %v759 = vsel %vm758, %v751, %v755
  %v760 = vand.u32 2147483647, %v750
  %vm761 = vcmp.eq.f32.partialorder %v760, 8.507059e+37
  %v762 = vand.u32 %v750, 2147483648
  %v763 = vor.u32 1.1754944e-38, %v762
  %v764 = vsel %vm761, %v763, %v759
  %v765 = vmul.f32 1.0, %v764
  %v766 = vtanh.pop %v746
  %767 = vrot.lane.b32.xlu0 %v765, 96
  %v768 = vpop.permute.xlu0 %767
  %769 = vrot.lane.b32.xlu0 %v766, 64
  %v770 = vpop.permute.xlu0 %769
  %771 = vrot.lane.b32.xlu0 %v765, 32
  %v772 = vpop.permute.xlu0 %771
  %v773 = vmul.f32 %v768, %v633
  %v774 = vmul.f32 %v765, %v770
  %v775 = vadd.f32 %v773, %v774
  %v776 = vtanh.pop %v775
  %v777 = vmul.f32 %v772, %v776
  %v778 = vpack.c.bf16 %v777, %v777
  %v780 = vsel %vm512, %v778, 0
  %782 = vmatpush.bf16.msra.mxu0 0
  %783 = vmatpush.bf16.msra.mxu0 0
  %784 = vmatpush.bf16.msra.mxu0 0
  %785 = vmatpush.bf16.msra.mxu0 0
  %786 = vmatpush.bf16.msra.mxu0 0
  %787 = vmatpush.bf16.msra.mxu0 0
  %788 = vmatpush.bf16.msra.mxu0 %v584
  %789 = vmatpush.bf16.msra.mxu0 %v583
  %790 = vmatmul.bf16.gmra.mxu0 %v780
  %v791 = vpop.f32.mrf.mxu0
  %v792 = vadd.f32 0.0, %v791
  %v793 = vpop.f32.mrf.mxu0
  %794 = vdwg.mxu0
  %795 = vmatpush.bf16.msra.mxu0 0
  %796 = vmatpush.bf16.msra.mxu0 0
  %797 = vmatpush.bf16.msra.mxu0 0
  %798 = vmatpush.bf16.msra.mxu0 0
  %799 = vmatpush.bf16.msra.mxu0 0
  %800 = vmatpush.bf16.msra.mxu0 0
  %801 = vmatpush.bf16.msra.mxu0 %v642
  %802 = vmatpush.bf16.msra.mxu0 %v641
  %803 = vmatmul.bf16.gmra.mxu0 %v780
  %v804 = vpop.f32.mrf.mxu0
  %v805 = vadd.f32 0.0, %v804
  %v806 = vpop.f32.mrf.mxu0
  %807 = vdwg.mxu0
  %v808 = vadd.f32 %v805, %v674
  %810 = vrot.lane.b32.xlu0 %v808, 8
  %v811 = vpop.permute.xlu0 %810
  %vm813 = vcmask 123968
  %814 = vst.msk [vmem:[%s2] sm:$0x3] %vm813, %v811
  %816 = vrot.lane.b32.xlu0 %v745, 8
  %v817 = vpop.permute.xlu0 %816
  %v819 = vsel %vm47, %v808, %v817
  %v820 = vpack.c.bf16 %v819, %v819
  %v822 = vsel %vm66, %v820, 0
  %824 = vmatpush.bf16.msra.mxu0 0
  %825 = vmatpush.bf16.msra.mxu0 0
  %826 = vmatpush.bf16.msra.mxu0 0
  %827 = vmatpush.bf16.msra.mxu0 0
  %828 = vmatpush.bf16.msra.mxu0 0
  %829 = vmatpush.bf16.msra.mxu0 %v700
  %830 = vmatpush.bf16.msra.mxu0 %v692
  %831 = vmatpush.bf16.msra.mxu0 %v691
  %832 = vmatmul.bf16.gmra.mxu0 %v822
  %v833 = vpop.f32.mrf.mxu0
  %v834 = vadd.f32 %v680, %v833
  %v835 = vpop.f32.mrf.mxu0
  %836 = vdwg.mxu0
  %v837 = vxor.u32 %v834, 2147483648
  %v838 = vmul.f32 %v837, 1.442695
  %v839 = vpow.pop %v838
  %v840 = vadd.f32 %v839, 1.0
  %v841 = vrcp.pop %v840
  %v842 = vmul.f32 %v840, %v841
  %v843 = vsub.f32 1.0, %v842
  %v844 = vmul.f32 %v841, %v843
  %v845 = vadd.f32 %v841, %v844
  %vm846 = vweird.f32 %v840
  %vm847 = vweird.f32 %v841
  %vm848 = vmor %vm846, %vm847
  %v849 = vsel %vm848, %v841, %v845
  %v850 = vand.u32 2147483647, %v840
  %vm851 = vcmp.eq.f32.partialorder %v850, 8.507059e+37
  %v852 = vand.u32 %v840, 2147483648
  %v853 = vor.u32 1.1754944e-38, %v852
  %v854 = vsel %vm851, %v853, %v849
  %v855 = vmul.f32 1.0, %v854
  %v856 = vtanh.pop %v834
  %857 = vrot.lane.b32.xlu0 %v855, 96
  %v858 = vpop.permute.xlu0 %857
  %859 = vrot.lane.b32.xlu0 %v856, 64
  %v860 = vpop.permute.xlu0 %859
  %861 = vrot.lane.b32.xlu0 %v855, 32
  %v862 = vpop.permute.xlu0 %861
  %v863 = vmul.f32 %v858, %v743
  %v864 = vmul.f32 %v855, %v860
  %v865 = vadd.f32 %v863, %v864
  %v866 = vtanh.pop %v865
  %v867 = vmul.f32 %v862, %v866
  %v868 = vadd.f32 %v792, %v603
  %v869 = vxor.u32 %v868, 2147483648
  %v870 = vmul.f32 %v869, 1.442695
  %v871 = vpow.pop %v870
  %v872 = vadd.f32 %v871, 1.0
  %v873 = vrcp.pop %v872
  %v874 = vmul.f32 %v872, %v873
  %v875 = vsub.f32 1.0, %v874
  %v876 = vmul.f32 %v873, %v875
  %v877 = vadd.f32 %v873, %v876
  %vm878 = vweird.f32 %v872
  %vm879 = vweird.f32 %v873
  %vm880 = vmor %vm878, %vm879
  %v881 = vsel %vm880, %v873, %v877
  %v882 = vand.u32 2147483647, %v872
  %vm883 = vcmp.eq.f32.partialorder %v882, 8.507059e+37
  %v884 = vand.u32 %v872, 2147483648
  %v885 = vor.u32 1.1754944e-38, %v884
  %v886 = vsel %vm883, %v885, %v881
  %v887 = vmul.f32 1.0, %v886
  %v888 = vtanh.pop %v868
  %889 = vrot.lane.b32.xlu0 %v887, 96
  %v890 = vpop.permute.xlu0 %889
  %891 = vrot.lane.b32.xlu0 %v888, 64
  %v892 = vpop.permute.xlu0 %891
  %893 = vrot.lane.b32.xlu0 %v887, 32
  %v894 = vpop.permute.xlu0 %893
  %v895 = vmul.f32 %v890, %v775
  %v896 = vmul.f32 %v887, %v892
  %v897 = vadd.f32 %v895, %v896
  %v898 = vtanh.pop %v897
  %v899 = vmul.f32 %v894, %v898
  %v900 = vpack.c.bf16 %v899, %v899
  %v902 = vsel %vm512, %v900, 0
  %904 = vmatpush.bf16.msra.mxu0 0
  %905 = vmatpush.bf16.msra.mxu0 0
  %906 = vmatpush.bf16.msra.mxu0 0
  %907 = vmatpush.bf16.msra.mxu0 0
  %908 = vmatpush.bf16.msra.mxu0 0
  %909 = vmatpush.bf16.msra.mxu0 0
  %910 = vmatpush.bf16.msra.mxu0 %v584
  %911 = vmatpush.bf16.msra.mxu0 %v583
  %912 = vmatmul.bf16.gmra.mxu0 %v902
  %v913 = vpop.f32.mrf.mxu0
  %v914 = vadd.f32 0.0, %v913
  %v915 = vpop.f32.mrf.mxu0
  %916 = vdwg.mxu0
  %917 = vmatpush.bf16.msra.mxu0 0
  %918 = vmatpush.bf16.msra.mxu0 0
  %919 = vmatpush.bf16.msra.mxu0 0
  %920 = vmatpush.bf16.msra.mxu0 0
  %921 = vmatpush.bf16.msra.mxu0 0
  %922 = vmatpush.bf16.msra.mxu0 0
  %923 = vmatpush.bf16.msra.mxu0 %v642
  %924 = vmatpush.bf16.msra.mxu0 %v641
  %925 = vmatmul.bf16.gmra.mxu0 %v902
  %v926 = vpop.f32.mrf.mxu0
  %v927 = vadd.f32 0.0, %v926
  %v928 = vpop.f32.mrf.mxu0
  %929 = vdwg.mxu0
  %v930 = vadd.f32 %v927, %v674
  %932 = vrot.lane.b32.xlu0 %v930, 16
  %v933 = vpop.permute.xlu0 %932
  %vm935 = vcmask 189568
  %936 = vst.msk [vmem:[%s2] sm:$0x3] %vm935, %v933
  %938 = vrot.lane.b32.xlu0 %v867, 8
  %v939 = vpop.permute.xlu0 %938
  %v941 = vsel %vm47, %v930, %v939
  %v942 = vpack.c.bf16 %v941, %v941
  %v944 = vsel %vm66, %v942, 0
  %946 = vmatpush.bf16.msra.mxu0 0
  %947 = vmatpush.bf16.msra.mxu0 0
  %948 = vmatpush.bf16.msra.mxu0 0
  %949 = vmatpush.bf16.msra.mxu0 0
  %950 = vmatpush.bf16.msra.mxu0 0
  %951 = vmatpush.bf16.msra.mxu0 %v700
  %952 = vmatpush.bf16.msra.mxu0 %v692
  %953 = vmatpush.bf16.msra.mxu0 %v691
  %954 = vmatmul.bf16.gmra.mxu0 %v944
  %v955 = vpop.f32.mrf.mxu0
  %v956 = vadd.f32 %v680, %v955
  %v957 = vpop.f32.mrf.mxu0
  %958 = vdwg.mxu0
  %v959 = vxor.u32 %v956, 2147483648
  %v960 = vmul.f32 %v959, 1.442695
  %v961 = vpow.pop %v960
  %v962 = vadd.f32 %v961, 1.0
  %v963 = vrcp.pop %v962
  %v964 = vmul.f32 %v962, %v963
  %v965 = vsub.f32 1.0, %v964
  %v966 = vmul.f32 %v963, %v965
  %v967 = vadd.f32 %v963, %v966
  %vm968 = vweird.f32 %v962
  %vm969 = vweird.f32 %v963
  %vm970 = vmor %vm968, %vm969
  %v971 = vsel %vm970, %v963, %v967
  %v972 = vand.u32 2147483647, %v962
  %vm973 = vcmp.eq.f32.partialorder %v972, 8.507059e+37
  %v974 = vand.u32 %v962, 2147483648
  %v975 = vor.u32 1.1754944e-38, %v974
  %v976 = vsel %vm973, %v975, %v971
  %v977 = vmul.f32 1.0, %v976
  %v978 = vtanh.pop %v956
  %979 = vrot.lane.b32.xlu0 %v977, 96
  %v980 = vpop.permute.xlu0 %979
  %981 = vrot.lane.b32.xlu0 %v978, 64
  %v982 = vpop.permute.xlu0 %981
  %983 = vrot.lane.b32.xlu0 %v977, 32
  %v984 = vpop.permute.xlu0 %983
  %v985 = vmul.f32 %v980, %v865
  %v986 = vmul.f32 %v977, %v982
  %v987 = vadd.f32 %v985, %v986
  %v988 = vtanh.pop %v987
  %v989 = vmul.f32 %v984, %v988
  %v990 = vadd.f32 %v914, %v603
  %v991 = vxor.u32 %v990, 2147483648
  %v992 = vmul.f32 %v991, 1.442695
  %v993 = vpow.pop %v992
  %v994 = vadd.f32 %v993, 1.0
  %v995 = vrcp.pop %v994
  %v996 = vmul.f32 %v994, %v995
  %v997 = vsub.f32 1.0, %v996
  %v998 = vmul.f32 %v995, %v997
  %v999 = vadd.f32 %v995, %v998
  %vm1000 = vweird.f32 %v994
  %vm1001 = vweird.f32 %v995
  %vm1002 = vmor %vm1000, %vm1001
  %v1003 = vsel %vm1002, %v995, %v999
  %v1004 = vand.u32 2147483647, %v994
  %vm1005 = vcmp.eq.f32.partialorder %v1004, 8.507059e+37
  %v1006 = vand.u32 %v994, 2147483648
  %v1007 = vor.u32 1.1754944e-38, %v1006
  %v1008 = vsel %vm1005, %v1007, %v1003
  %v1009 = vmul.f32 1.0, %v1008
  %v1010 = vtanh.pop %v990
  %1011 = vrot.lane.b32.xlu0 %v1009, 96
  %v1012 = vpop.permute.xlu0 %1011
  %1013 = vrot.lane.b32.xlu0 %v1010, 64
  %v1014 = vpop.permute.xlu0 %1013
  %1015 = vrot.lane.b32.xlu0 %v1009, 32
  %v1016 = vpop.permute.xlu0 %1015
  %v1017 = vmul.f32 %v1012, %v897
  %v1018 = vmul.f32 %v1009, %v1014
  %v1019 = vadd.f32 %v1017, %v1018
  %v1020 = vtanh.pop %v1019
  %v1021 = vmul.f32 %v1016, %v1020
  %v1022 = vpack.c.bf16 %v1021, %v1021
  %v1024 = vsel %vm512, %v1022, 0
  %1026 = vmatpush.bf16.msra.mxu0 0
  %1027 = vmatpush.bf16.msra.mxu0 0
  %1028 = vmatpush.bf16.msra.mxu0 0
  %1029 = vmatpush.bf16.msra.mxu0 0
  %1030 = vmatpush.bf16.msra.mxu0 0
  %1031 = vmatpush.bf16.msra.mxu0 0
  %1032 = vmatpush.bf16.msra.mxu0 %v584
  %1033 = vmatpush.bf16.msra.mxu0 %v583
  %1034 = vmatmul.bf16.gmra.mxu0 %v1024
  %v1035 = vpop.f32.mrf.mxu0
  %v1036 = vadd.f32 0.0, %v1035
  %v1037 = vpop.f32.mrf.mxu0
  %1038 = vdwg.mxu0
  %1039 = vmatpush.bf16.msra.mxu0 0
  %1040 = vmatpush.bf16.msra.mxu0 0
  %1041 = vmatpush.bf16.msra.mxu0 0
  %1042 = vmatpush.bf16.msra.mxu0 0
  %1043 = vmatpush.bf16.msra.mxu0 0
  %1044 = vmatpush.bf16.msra.mxu0 0
  %1045 = vmatpush.bf16.msra.mxu0 %v642
  %1046 = vmatpush.bf16.msra.mxu0 %v641
  %1047 = vmatmul.bf16.gmra.mxu0 %v1024
  %v1048 = vpop.f32.mrf.mxu0
  %v1049 = vadd.f32 0.0, %v1048
  %v1050 = vpop.f32.mrf.mxu0
  %1051 = vdwg.mxu0
  %v1052 = vadd.f32 %v1049, %v674
  %1054 = vrot.lane.b32.xlu0 %v1052, 24
  %v1055 = vpop.permute.xlu0 %1054
  %vm1057 = vcmask 255168
  %1058 = vst.msk [vmem:[%s2] sm:$0x3] %vm1057, %v1055
  %1060 = vrot.lane.b32.xlu0 %v989, 8
  %v1061 = vpop.permute.xlu0 %1060
  %v1063 = vsel %vm47, %v1052, %v1061
  %v1064 = vpack.c.bf16 %v1063, %v1063
  %v1066 = vsel %vm66, %v1064, 0
  %1068 = vmatpush.bf16.msra.mxu0 0
  %1069 = vmatpush.bf16.msra.mxu0 0
  %1070 = vmatpush.bf16.msra.mxu0 0
  %1071 = vmatpush.bf16.msra.mxu0 0
  %1072 = vmatpush.bf16.msra.mxu0 0
  %1073 = vmatpush.bf16.msra.mxu0 %v700
  %1074 = vmatpush.bf16.msra.mxu0 %v692
  %1075 = vmatpush.bf16.msra.mxu0 %v691
  %1076 = vmatmul.bf16.gmra.mxu0 %v1066
  %v1077 = vpop.f32.mrf.mxu0
  %v1078 = vadd.f32 %v680, %v1077
  %v1079 = vpop.f32.mrf.mxu0
  %1080 = vdwg.mxu0
  %v1081 = vxor.u32 %v1078, 2147483648
  %v1082 = vmul.f32 %v1081, 1.442695
  %v1083 = vpow.pop %v1082
  %v1084 = vadd.f32 %v1083, 1.0
  %v1085 = vrcp.pop %v1084
  %v1086 = vmul.f32 %v1084, %v1085
  %v1087 = vsub.f32 1.0, %v1086
  %v1088 = vmul.f32 %v1085, %v1087
  %v1089 = vadd.f32 %v1085, %v1088
  %vm1090 = vweird.f32 %v1084
  %vm1091 = vweird.f32 %v1085
  %vm1092 = vmor %vm1090, %vm1091
  %v1093 = vsel %vm1092, %v1085, %v1089
  %v1094 = vand.u32 2147483647, %v1084
  %vm1095 = vcmp.eq.f32.partialorder %v1094, 8.507059e+37
  %v1096 = vand.u32 %v1084, 2147483648
  %v1097 = vor.u32 1.1754944e-38, %v1096
  %v1098 = vsel %vm1095, %v1097, %v1093
  %v1099 = vmul.f32 1.0, %v1098
  %v1100 = vtanh.pop %v1078
  %1101 = vrot.lane.b32.xlu0 %v1099, 96
  %v1102 = vpop.permute.xlu0 %1101
  %1103 = vrot.lane.b32.xlu0 %v1100, 64
  %v1104 = vpop.permute.xlu0 %1103
  %1105 = vrot.lane.b32.xlu0 %v1099, 32
  %v1106 = vpop.permute.xlu0 %1105
  %v1107 = vmul.f32 %v1102, %v987
  %v1108 = vmul.f32 %v1099, %v1104
  %v1109 = vadd.f32 %v1107, %v1108
  %v1110 = vtanh.pop %v1109
  %v1111 = vmul.f32 %v1106, %v1110
  %v1112 = vadd.f32 %v1036, %v603
  %v1113 = vxor.u32 %v1112, 2147483648
  %v1114 = vmul.f32 %v1113, 1.442695
  %v1115 = vpow.pop %v1114
  %v1116 = vadd.f32 %v1115, 1.0
  %v1117 = vrcp.pop %v1116
  %v1118 = vmul.f32 %v1116, %v1117
  %v1119 = vsub.f32 1.0, %v1118
  %v1120 = vmul.f32 %v1117, %v1119
  %v1121 = vadd.f32 %v1117, %v1120
  %vm1122 = vweird.f32 %v1116
  %vm1123 = vweird.f32 %v1117
  %vm1124 = vmor %vm1122, %vm1123
  %v1125 = vsel %vm1124, %v1117, %v1121
  %v1126 = vand.u32 2147483647, %v1116
  %vm1127 = vcmp.eq.f32.partialorder %v1126, 8.507059e+37
  %v1128 = vand.u32 %v1116, 2147483648
  %v1129 = vor.u32 1.1754944e-38, %v1128
  %v1130 = vsel %vm1127, %v1129, %v1125
  %v1131 = vmul.f32 1.0, %v1130
  %v1132 = vtanh.pop %v1112
  %1133 = vrot.lane.b32.xlu0 %v1131, 96
  %v1134 = vpop.permute.xlu0 %1133
  %1135 = vrot.lane.b32.xlu0 %v1132, 64
  %v1136 = vpop.permute.xlu0 %1135
  %1137 = vrot.lane.b32.xlu0 %v1131, 32
  %v1138 = vpop.permute.xlu0 %1137
  %v1139 = vmul.f32 %v1134, %v1019
  %v1140 = vmul.f32 %v1131, %v1136
  %v1141 = vadd.f32 %v1139, %v1140
  %v1142 = vtanh.pop %v1141
  %v1143 = vmul.f32 %v1138, %v1142
  %v1144 = vpack.c.bf16 %v1143, %v1143
  %v1146 = vsel %vm512, %v1144, 0
  %1148 = vmatpush.bf16.msra.mxu0 0
  %1149 = vmatpush.bf16.msra.mxu0 0
  %1150 = vmatpush.bf16.msra.mxu0 0
  %1151 = vmatpush.bf16.msra.mxu0 0
  %1152 = vmatpush.bf16.msra.mxu0 0
  %1153 = vmatpush.bf16.msra.mxu0 0
  %1154 = vmatpush.bf16.msra.mxu0 %v584
  %1155 = vmatpush.bf16.msra.mxu0 %v583
  %1156 = vmatmul.bf16.gmra.mxu0 %v1146
  %v1157 = vpop.f32.mrf.mxu0
  %v1158 = vadd.f32 0.0, %v1157
  %v1159 = vpop.f32.mrf.mxu0
  %1160 = vdwg.mxu0
  %1161 = vmatpush.bf16.msra.mxu0 0
  %1162 = vmatpush.bf16.msra.mxu0 0
  %1163 = vmatpush.bf16.msra.mxu0 0
  %1164 = vmatpush.bf16.msra.mxu0 0
  %1165 = vmatpush.bf16.msra.mxu0 0
  %1166 = vmatpush.bf16.msra.mxu0 0
  %1167 = vmatpush.bf16.msra.mxu0 %v642
  %1168 = vmatpush.bf16.msra.mxu0 %v641
  %1169 = vmatmul.bf16.gmra.mxu0 %v1146
  %v1170 = vpop.f32.mrf.mxu0
  %v1171 = vadd.f32 0.0, %v1170
  %v1172 = vpop.f32.mrf.mxu0
  %1173 = vdwg.mxu0
  %v1174 = vadd.f32 %v1171, %v674
  %1176 = vrot.lane.b32.xlu0 %v1174, 32
  %v1177 = vpop.permute.xlu0 %1176
  %vm1179 = vcmask 320768
  %1180 = vst.msk [vmem:[%s2] sm:$0x3] %vm1179, %v1177
  %1182 = vrot.lane.b32.xlu0 %v1111, 8
  %v1183 = vpop.permute.xlu0 %1182
  %v1185 = vsel %vm47, %v1174, %v1183
  %v1186 = vpack.c.bf16 %v1185, %v1185
  %v1188 = vsel %vm66, %v1186, 0
  %1190 = vmatpush.bf16.msra.mxu0 0
  %1191 = vmatpush.bf16.msra.mxu0 0
  %1192 = vmatpush.bf16.msra.mxu0 0
  %1193 = vmatpush.bf16.msra.mxu0 0
  %1194 = vmatpush.bf16.msra.mxu0 0
  %1195 = vmatpush.bf16.msra.mxu0 %v700
  %1196 = vmatpush.bf16.msra.mxu0 %v692
  %1197 = vmatpush.bf16.msra.mxu0 %v691
  %1198 = vmatmul.bf16.gmra.mxu0 %v1188
  %v1199 = vpop.f32.mrf.mxu0
  %v1200 = vadd.f32 %v680, %v1199
  %v1201 = vpop.f32.mrf.mxu0
  %1202 = vdwg.mxu0
  %v1203 = vxor.u32 %v1200, 2147483648
  %v1204 = vmul.f32 %v1203, 1.442695
  %v1205 = vpow.pop %v1204
  %v1206 = vadd.f32 %v1205, 1.0
  %v1207 = vrcp.pop %v1206
  %v1208 = vmul.f32 %v1206, %v1207
  %v1209 = vsub.f32 1.0, %v1208
  %v1210 = vmul.f32 %v1207, %v1209
  %v1211 = vadd.f32 %v1207, %v1210
  %vm1212 = vweird.f32 %v1206
  %vm1213 = vweird.f32 %v1207
  %vm1214 = vmor %vm1212, %vm1213
  %v1215 = vsel %vm1214, %v1207, %v1211
  %v1216 = vand.u32 2147483647, %v1206
  %vm1217 = vcmp.eq.f32.partialorder %v1216, 8.507059e+37
  %v1218 = vand.u32 %v1206, 2147483648
  %v1219 = vor.u32 1.1754944e-38, %v1218
  %v1220 = vsel %vm1217, %v1219, %v1215
  %v1221 = vmul.f32 1.0, %v1220
  %v1222 = vtanh.pop %v1200
  %1223 = vrot.lane.b32.xlu0 %v1221, 96
  %v1224 = vpop.permute.xlu0 %1223
  %1225 = vrot.lane.b32.xlu0 %v1222, 64
  %v1226 = vpop.permute.xlu0 %1225
  %1227 = vrot.lane.b32.xlu0 %v1221, 32
  %v1228 = vpop.permute.xlu0 %1227
  %v1229 = vmul.f32 %v1224, %v1109
  %v1230 = vmul.f32 %v1221, %v1226
  %v1231 = vadd.f32 %v1229, %v1230
  %v1232 = vtanh.pop %v1231
  %v1233 = vmul.f32 %v1228, %v1232
  %v1234 = vadd.f32 %v1158, %v603
  %v1235 = vxor.u32 %v1234, 2147483648
  %v1236 = vmul.f32 %v1235, 1.442695
  %v1237 = vpow.pop %v1236
  %v1238 = vadd.f32 %v1237, 1.0
  %v1239 = vrcp.pop %v1238
  %v1240 = vmul.f32 %v1238, %v1239
  %v1241 = vsub.f32 1.0, %v1240
  %v1242 = vmul.f32 %v1239, %v1241
  %v1243 = vadd.f32 %v1239, %v1242
  %vm1244 = vweird.f32 %v1238
  %vm1245 = vweird.f32 %v1239
  %vm1246 = vmor %vm1244, %vm1245
  %v1247 = vsel %vm1246, %v1239, %v1243
  %v1248 = vand.u32 2147483647, %v1238
  %vm1249 = vcmp.eq.f32.partialorder %v1248, 8.507059e+37
  %v1250 = vand.u32 %v1238, 2147483648
  %v1251 = vor.u32 1.1754944e-38, %v1250
  %v1252 = vsel %vm1249, %v1251, %v1247
  %v1253 = vmul.f32 1.0, %v1252
  %v1254 = vtanh.pop %v1234
  %1255 = vrot.lane.b32.xlu0 %v1253, 96
  %v1256 = vpop.permute.xlu0 %1255
  %1257 = vrot.lane.b32.xlu0 %v1254, 64
  %v1258 = vpop.permute.xlu0 %1257
  %1259 = vrot.lane.b32.xlu0 %v1253, 32
  %v1260 = vpop.permute.xlu0 %1259
  %v1261 = vmul.f32 %v1256, %v1141
  %v1262 = vmul.f32 %v1253, %v1258
  %v1263 = vadd.f32 %v1261, %v1262
  %v1264 = vtanh.pop %v1263
  %v1265 = vmul.f32 %v1260, %v1264
  %v1266 = vpack.c.bf16 %v1265, %v1265
  %v1268 = vsel %vm512, %v1266, 0
  %1270 = vmatpush.bf16.msra.mxu0 0
  %1271 = vmatpush.bf16.msra.mxu0 0
  %1272 = vmatpush.bf16.msra.mxu0 0
  %1273 = vmatpush.bf16.msra.mxu0 0
  %1274 = vmatpush.bf16.msra.mxu0 0
  %1275 = vmatpush.bf16.msra.mxu0 0
  %1276 = vmatpush.bf16.msra.mxu0 %v584
  %1277 = vmatpush.bf16.msra.mxu0 %v583
  %1278 = vmatmul.bf16.gmra.mxu0 %v1268
  %v1279 = vpop.f32.mrf.mxu0
  %v1280 = vadd.f32 0.0, %v1279
  %v1281 = vpop.f32.mrf.mxu0
  %1282 = vdwg.mxu0
  %1283 = vmatpush.bf16.msra.mxu0 0
  %1284 = vmatpush.bf16.msra.mxu0 0
  %1285 = vmatpush.bf16.msra.mxu0 0
  %1286 = vmatpush.bf16.msra.mxu0 0
  %1287 = vmatpush.bf16.msra.mxu0 0
  %1288 = vmatpush.bf16.msra.mxu0 0
  %1289 = vmatpush.bf16.msra.mxu0 %v642
  %1290 = vmatpush.bf16.msra.mxu0 %v641
  %1291 = vmatmul.bf16.gmra.mxu0 %v1268
  %v1292 = vpop.f32.mrf.mxu0
  %v1293 = vadd.f32 0.0, %v1292
  %v1294 = vpop.f32.mrf.mxu0
  %1295 = vdwg.mxu0
  %v1296 = vadd.f32 %v1293, %v674
  %1298 = vrot.lane.b32.xlu0 %v1296, 40
  %v1299 = vpop.permute.xlu0 %1298
  %vm1301 = vcmask 386368
  %1302 = vst.msk [vmem:[%s2] sm:$0x3] %vm1301, %v1299
  %1304 = vrot.lane.b32.xlu0 %v1233, 8
  %v1305 = vpop.permute.xlu0 %1304
  %v1307 = vsel %vm47, %v1296, %v1305
  %v1308 = vpack.c.bf16 %v1307, %v1307
  %v1310 = vsel %vm66, %v1308, 0
  %1312 = vmatpush.bf16.msra.mxu0 0
  %1313 = vmatpush.bf16.msra.mxu0 0
  %1314 = vmatpush.bf16.msra.mxu0 0
  %1315 = vmatpush.bf16.msra.mxu0 0
  %1316 = vmatpush.bf16.msra.mxu0 0
  %1317 = vmatpush.bf16.msra.mxu0 %v700
  %1318 = vmatpush.bf16.msra.mxu0 %v692
  %1319 = vmatpush.bf16.msra.mxu0 %v691
  %1320 = vmatmul.bf16.gmra.mxu0 %v1310
  %v1321 = vpop.f32.mrf.mxu0
  %v1322 = vadd.f32 %v680, %v1321
  %v1323 = vpop.f32.mrf.mxu0
  %1324 = vdwg.mxu0
  %v1325 = vxor.u32 %v1322, 2147483648
  %v1326 = vmul.f32 %v1325, 1.442695
  %v1327 = vpow.pop %v1326
  %v1328 = vadd.f32 %v1327, 1.0
  %v1329 = vrcp.pop %v1328
  %v1330 = vmul.f32 %v1328, %v1329
  %v1331 = vsub.f32 1.0, %v1330
  %v1332 = vmul.f32 %v1329, %v1331
  %v1333 = vadd.f32 %v1329, %v1332
  %vm1334 = vweird.f32 %v1328
  %vm1335 = vweird.f32 %v1329
  %vm1336 = vmor %vm1334, %vm1335
  %v1337 = vsel %vm1336, %v1329, %v1333
  %v1338 = vand.u32 2147483647, %v1328
  %vm1339 = vcmp.eq.f32.partialorder %v1338, 8.507059e+37
  %v1340 = vand.u32 %v1328, 2147483648
  %v1341 = vor.u32 1.1754944e-38, %v1340
  %v1342 = vsel %vm1339, %v1341, %v1337
  %v1343 = vmul.f32 1.0, %v1342
  %v1344 = vtanh.pop %v1322
  %1345 = vrot.lane.b32.xlu0 %v1343, 96
  %v1346 = vpop.permute.xlu0 %1345
  %1347 = vrot.lane.b32.xlu0 %v1344, 64
  %v1348 = vpop.permute.xlu0 %1347
  %1349 = vrot.lane.b32.xlu0 %v1343, 32
  %v1350 = vpop.permute.xlu0 %1349
  %v1351 = vmul.f32 %v1346, %v1231
  %v1352 = vmul.f32 %v1343, %v1348
  %v1353 = vadd.f32 %v1351, %v1352
  %v1354 = vtanh.pop %v1353
  %v1355 = vmul.f32 %v1350, %v1354
  %v1356 = vadd.f32 %v1280, %v603
  %v1357 = vxor.u32 %v1356, 2147483648
  %v1358 = vmul.f32 %v1357, 1.442695
  %v1359 = vpow.pop %v1358
  %v1360 = vadd.f32 %v1359, 1.0
  %v1361 = vrcp.pop %v1360
  %v1362 = vmul.f32 %v1360, %v1361
  %v1363 = vsub.f32 1.0, %v1362
  %v1364 = vmul.f32 %v1361, %v1363
  %v1365 = vadd.f32 %v1361, %v1364
  %vm1366 = vweird.f32 %v1360
  %vm1367 = vweird.f32 %v1361
  %vm1368 = vmor %vm1366, %vm1367
  %v1369 = vsel %vm1368, %v1361, %v1365
  %v1370 = vand.u32 2147483647, %v1360
  %vm1371 = vcmp.eq.f32.partialorder %v1370, 8.507059e+37
  %v1372 = vand.u32 %v1360, 2147483648
  %v1373 = vor.u32 1.1754944e-38, %v1372
  %v1374 = vsel %vm1371, %v1373, %v1369
  %v1375 = vmul.f32 1.0, %v1374
  %v1376 = vtanh.pop %v1356
  %1377 = vrot.lane.b32.xlu0 %v1375, 96
  %v1378 = vpop.permute.xlu0 %1377
  %1379 = vrot.lane.b32.xlu0 %v1376, 64
  %v1380 = vpop.permute.xlu0 %1379
  %1381 = vrot.lane.b32.xlu0 %v1375, 32
  %v1382 = vpop.permute.xlu0 %1381
  %v1383 = vmul.f32 %v1378, %v1263
  %v1384 = vmul.f32 %v1375, %v1380
  %v1385 = vadd.f32 %v1383, %v1384
  %v1386 = vtanh.pop %v1385
  %v1387 = vmul.f32 %v1382, %v1386
  %v1388 = vpack.c.bf16 %v1387, %v1387
  %v1390 = vsel %vm512, %v1388, 0
  %1392 = vmatpush.bf16.msra.mxu0 0
  %1393 = vmatpush.bf16.msra.mxu0 0
  %1394 = vmatpush.bf16.msra.mxu0 0
  %1395 = vmatpush.bf16.msra.mxu0 0
  %1396 = vmatpush.bf16.msra.mxu0 0
  %1397 = vmatpush.bf16.msra.mxu0 0
  %1398 = vmatpush.bf16.msra.mxu0 %v584
  %1399 = vmatpush.bf16.msra.mxu0 %v583
  %1400 = vmatmul.bf16.gmra.mxu0 %v1390
  %v1401 = vpop.f32.mrf.mxu0
  %v1402 = vadd.f32 0.0, %v1401
  %v1403 = vpop.f32.mrf.mxu0
  %1404 = vdwg.mxu0
  %1405 = vmatpush.bf16.msra.mxu0 0
  %1406 = vmatpush.bf16.msra.mxu0 0
  %1407 = vmatpush.bf16.msra.mxu0 0
  %1408 = vmatpush.bf16.msra.mxu0 0
  %1409 = vmatpush.bf16.msra.mxu0 0
  %1410 = vmatpush.bf16.msra.mxu0 0
  %1411 = vmatpush.bf16.msra.mxu0 %v642
  %1412 = vmatpush.bf16.msra.mxu0 %v641
  %1413 = vmatmul.bf16.gmra.mxu0 %v1390
  %v1414 = vpop.f32.mrf.mxu0
  %v1415 = vadd.f32 0.0, %v1414
  %v1416 = vpop.f32.mrf.mxu0
  %1417 = vdwg.mxu0
  %v1418 = vadd.f32 %v1415, %v674
  %1420 = vrot.lane.b32.xlu0 %v1418, 48
  %v1421 = vpop.permute.xlu0 %1420
  %vm1423 = vcmask 451968
  %1424 = vst.msk [vmem:[%s2] sm:$0x3] %vm1423, %v1421
  %1426 = vrot.lane.b32.xlu0 %v1355, 8
  %v1427 = vpop.permute.xlu0 %1426
  %v1429 = vsel %vm47, %v1418, %v1427
  %v1430 = vpack.c.bf16 %v1429, %v1429
  %v1432 = vsel %vm66, %v1430, 0
  %1434 = vmatpush.bf16.msra.mxu0 0
  %1435 = vmatpush.bf16.msra.mxu0 0
  %1436 = vmatpush.bf16.msra.mxu0 0
  %1437 = vmatpush.bf16.msra.mxu0 0
  %1438 = vmatpush.bf16.msra.mxu0 0
  %1439 = vmatpush.bf16.msra.mxu0 %v700
  %1440 = vmatpush.bf16.msra.mxu0 %v692
  %1441 = vmatpush.bf16.msra.mxu0 %v691
  %1442 = vmatmul.bf16.gmra.mxu0 %v1432
  %v1443 = vpop.f32.mrf.mxu0
  %v1444 = vadd.f32 %v680, %v1443
  %v1445 = vpop.f32.mrf.mxu0
  %1446 = vdwg.mxu0
  %v1447 = vxor.u32 %v1444, 2147483648
  %v1448 = vmul.f32 %v1447, 1.442695
  %v1449 = vpow.pop %v1448
  %v1450 = vadd.f32 %v1449, 1.0
  %v1451 = vrcp.pop %v1450
  %v1452 = vmul.f32 %v1450, %v1451
  %v1453 = vsub.f32 1.0, %v1452
  %v1454 = vmul.f32 %v1451, %v1453
  %v1455 = vadd.f32 %v1451, %v1454
  %vm1456 = vweird.f32 %v1450
  %vm1457 = vweird.f32 %v1451
  %vm1458 = vmor %vm1456, %vm1457
  %v1459 = vsel %vm1458, %v1451, %v1455
  %v1460 = vand.u32 2147483647, %v1450
  %vm1461 = vcmp.eq.f32.partialorder %v1460, 8.507059e+37
  %v1462 = vand.u32 %v1450, 2147483648
  %v1463 = vor.u32 1.1754944e-38, %v1462
  %v1464 = vsel %vm1461, %v1463, %v1459
  %v1465 = vmul.f32 1.0, %v1464
  %v1466 = vtanh.pop %v1444
  %1467 = vrot.lane.b32.xlu0 %v1465, 96
  %v1468 = vpop.permute.xlu0 %1467
  %1469 = vrot.lane.b32.xlu0 %v1466, 64
  %v1470 = vpop.permute.xlu0 %1469
  %1471 = vrot.lane.b32.xlu0 %v1465, 32
  %v1472 = vpop.permute.xlu0 %1471
  %v1473 = vmul.f32 %v1468, %v1353
  %v1474 = vmul.f32 %v1465, %v1470
  %v1475 = vadd.f32 %v1473, %v1474
  %v1476 = vtanh.pop %v1475
  %v1477 = vmul.f32 %v1472, %v1476
  %v1478 = vadd.f32 %v1402, %v603
  %v1479 = vxor.u32 %v1478, 2147483648
  %v1480 = vmul.f32 %v1479, 1.442695
  %v1481 = vpow.pop %v1480
  %v1482 = vadd.f32 %v1481, 1.0
  %v1483 = vrcp.pop %v1482
  %v1484 = vmul.f32 %v1482, %v1483
  %v1485 = vsub.f32 1.0, %v1484
  %v1486 = vmul.f32 %v1483, %v1485
  %v1487 = vadd.f32 %v1483, %v1486
  %vm1488 = vweird.f32 %v1482
  %vm1489 = vweird.f32 %v1483
  %vm1490 = vmor %vm1488, %vm1489
  %v1491 = vsel %vm1490, %v1483, %v1487
  %v1492 = vand.u32 2147483647, %v1482
  %vm1493 = vcmp.eq.f32.partialorder %v1492, 8.507059e+37
  %v1494 = vand.u32 %v1482, 2147483648
  %v1495 = vor.u32 1.1754944e-38, %v1494
  %v1496 = vsel %vm1493, %v1495, %v1491
  %v1497 = vmul.f32 1.0, %v1496
  %v1498 = vtanh.pop %v1478
  %1499 = vrot.lane.b32.xlu0 %v1497, 96
  %v1500 = vpop.permute.xlu0 %1499
  %1501 = vrot.lane.b32.xlu0 %v1498, 64
  %v1502 = vpop.permute.xlu0 %1501
  %1503 = vrot.lane.b32.xlu0 %v1497, 32
  %v1504 = vpop.permute.xlu0 %1503
  %v1505 = vmul.f32 %v1500, %v1385
  %v1506 = vmul.f32 %v1497, %v1502
  %v1507 = vadd.f32 %v1505, %v1506
  %v1508 = vtanh.pop %v1507
  %v1509 = vmul.f32 %v1504, %v1508
  %v1510 = vpack.c.bf16 %v1509, %v1509
  %v1515 = vunpack.c.l.b16 %v21
  %v1516 = vunpack.c.l.b16 %v22
  %v1517 = vunpack.c.l.b16 %v23
  %v1518 = vunpack.c.l.b16 %v24
  %v1519 = vpack.c.b16 %v1516, %v1515
  %v1520 = vpack.c.b16 %v1518, %v1517
  %v1524 = vsel %vm512, %v1510, 0
  %1526 = vmatpush.bf16.msra.mxu0 0
  %1527 = vmatpush.bf16.msra.mxu0 0
  %1528 = vmatpush.bf16.msra.mxu0 0
  %1529 = vmatpush.bf16.msra.mxu0 0
  %1530 = vmatpush.bf16.msra.mxu0 0
  %1531 = vmatpush.bf16.msra.mxu0 0
  %1532 = vmatpush.bf16.msra.mxu0 %v1520
  %1533 = vmatpush.bf16.msra.mxu0 %v1519
  %1534 = vmatmul.bf16.gmra.mxu0 %v1524
  %v1535 = vpop.f32.mrf.mxu0
  %v1536 = vadd.f32 %v674, %v1535
  %v1537 = vpop.f32.mrf.mxu0
  %1538 = vdwg.mxu0
  %1540 = vrot.lane.b32.xlu0 %v1536, 56
  %v1541 = vpop.permute.xlu0 %1540
  %vm1543 = vcmask 517568
  %1544 = vst.msk [vmem:[%s2] sm:$0x3] %vm1543, %v1541
  %1546 = vrot.lane.b32.xlu0 %v1477, 8
  %v1547 = vpop.permute.xlu0 %1546
  %v1549 = vsel %vm47, %v1536, %v1547
  %v1550 = vpack.c.bf16 %v1549, %v1549
  %v1552 = vsel %vm66, %v1550, 0
  %1554 = vmatpush.bf16.msra.mxu0 0
  %1555 = vmatpush.bf16.msra.mxu0 0
  %1556 = vmatpush.bf16.msra.mxu0 0
  %1557 = vmatpush.bf16.msra.mxu0 0
  %1558 = vmatpush.bf16.msra.mxu0 0
  %1559 = vmatpush.bf16.msra.mxu0 %v700
  %1560 = vmatpush.bf16.msra.mxu0 %v692
  %1561 = vmatpush.bf16.msra.mxu0 %v691
  %1562 = vmatmul.bf16.gmra.mxu0 %v1552
  %v1563 = vpop.f32.mrf.mxu0
  %v1564 = vadd.f32 %v680, %v1563
  %v1565 = vpop.f32.mrf.mxu0
  %1566 = vdwg.mxu0
  %v1567 = vxor.u32 %v1564, 2147483648
  %v1568 = vmul.f32 %v1567, 1.442695
  %v1569 = vpow.pop %v1568
  %v1570 = vadd.f32 %v1569, 1.0
  %v1571 = vrcp.pop %v1570
  %v1572 = vmul.f32 %v1570, %v1571
  %v1573 = vsub.f32 1.0, %v1572
  %v1574 = vmul.f32 %v1571, %v1573
  %v1575 = vadd.f32 %v1571, %v1574
  %vm1576 = vweird.f32 %v1570
  %vm1577 = vweird.f32 %v1571
  %vm1578 = vmor %vm1576, %vm1577
  %v1579 = vsel %vm1578, %v1571, %v1575
  %v1580 = vand.u32 2147483647, %v1570
  %vm1581 = vcmp.eq.f32.partialorder %v1580, 8.507059e+37
  %v1582 = vand.u32 %v1570, 2147483648
  %v1583 = vor.u32 1.1754944e-38, %v1582
  %v1584 = vsel %vm1581, %v1583, %v1579
  %v1585 = vmul.f32 1.0, %v1584
  %v1586 = vtanh.pop %v1564
  %1587 = vrot.lane.b32.xlu0 %v1585, 96
  %v1588 = vpop.permute.xlu0 %1587
  %1589 = vrot.lane.b32.xlu0 %v1586, 64
  %v1590 = vpop.permute.xlu0 %1589
  %1591 = vrot.lane.b32.xlu0 %v1585, 32
  %v1592 = vpop.permute.xlu0 %1591
  %v1593 = vmul.f32 %v1588, %v1475
  %v1594 = vmul.f32 %v1585, %v1590
  %v1595 = vadd.f32 %v1593, %v1594
  %v1596 = vtanh.pop %v1595
  %v1597 = vmul.f32 %v1592, %v1596
  %v1598 = vperm.slane %v37, 0
  %v1599 = vmul.f32 %v1597, %v1598
  %vm1600 = vcmask 254976
  %v1601 = vsel %vm1600, %v1599, 0.0
  %1602 = vadd.xlane.f32.xlu0 %v1601
  %v1603 = vpop.xlane.xlu0 %1602
  %v1604 = vperm.slane %v36, 0
  %v1605 = vadd.f32 %v1603, %v1604
  %v1606 = vxor.u32 %v1605, 2147483648
  %v1607 = vmul.f32 %v1606, 1.442695
  %v1608 = vpow.pop %v1607
  %v1609 = vadd.f32 %v1608, 1.0
  %v1610 = vrcp.pop %v1609
  %v1611 = vmul.f32 %v1609, %v1610
  %v1612 = vsub.f32 1.0, %v1611
  %v1613 = vmul.f32 %v1610, %v1612
  %v1614 = vadd.f32 %v1610, %v1613
  %vm1615 = vweird.f32 %v1609
  %vm1616 = vweird.f32 %v1610
  %vm1617 = vmor %vm1615, %vm1616
  %v1618 = vsel %vm1617, %v1610, %v1614
  %v1619 = vand.u32 2147483647, %v1609
  %vm1620 = vcmp.eq.f32.partialorder %v1619, 8.507059e+37
  %v1621 = vand.u32 %v1609, 2147483648
  %v1622 = vor.u32 1.1754944e-38, %v1621
  %v1623 = vsel %vm1620, %v1622, %v1618
  %v1624 = vmul.f32 1.0, %v1623
  %1625 = vrot.lane.b32.xlu0 %v548, 64
  %v1626 = vpop.permute.xlu0 %1625
  %vm1628 = vcmask 648704
  %1629 = vst.msk [vmem:[%s2] sm:$0x3] %vm1628, %v1626
  %1631 = vrot.lane.b32.xlu0 %v534, 80
  %v1632 = vpop.permute.xlu0 %1631
  %vm1634 = vcmask 910976
  %1635 = vst.msk [vmem:[%s2] sm:$0x3] %vm1634, %v1632
  %1637 = vrot.lane.b32.xlu0 %v1624, 112
  %v1638 = vpop.permute.xlu0 %1637
  %vm1640 = vcmask 919424
  %1641 = vst.msk [vmem:[%s2] sm:$0x3] %vm1640, %v1638
  // Predicated region
  $region10: #{aad_forward.1} parent=0 // pred_check
    _
  $region11: #{aad_forward.1} parent=0 // pred_check_branch
    %1643 = sbr.rel (0) target = $region13
  $region12: #{aad_forward.1} parent=0 // pred_region
    _
  $region13: #{aad_forward.1} parent=0 // pred_fallthru
    _
  // Predicated region
  $region14: #{aad_forward.1} parent=0 // pred_check
    _
  $region15: #{aad_forward.1} parent=0 // pred_check_branch
    %1645 = sbr.rel (0) target = $region17
  $region16: #{aad_forward.1} parent=0 // pred_region
    _
  $region17: #{aad_forward.1} parent=0 // pred_fallthru
    _

</llo_original>
